<compile_context>
chip_gen: v5e
topology: v5e:2x2
jax: 0.10.0
libtpu: 0.0.40
codegen_flags: <defaults>
</compile_context>

<pallas_src>
import functools

import jax
import jax.numpy as jnp
from jax.experimental import pallas as pl
from jax.experimental.pallas import tpu as pltpu

H = 64      # embedding dim == LSTM hidden dim == linear width (real)
HP = 128    # hidden padded to one full vreg lane-width (gate / MLP alignment)
NG = 4      # LSTM gates (i, f, g, o)

# f32 keeps exact 1e-4 parity with the f32 reference.  On v6e/v7x the large operands
# (embedding table, W_ih^T, MLP weights) can move to bf16 once S*N grows (halves DMA
# bytes, native MXU rate); keep gates, c/h carries, biases and accumulators f32.
# On v5e stay f32 throughout (no bf16 VPU/EUP path).
COMPUTE_DTYPE = jnp.float32


def imdb_kernel(idx_ref, emb_ref, h0_ref, wih_ref, whh_ref, bg_ref,
                w1_ref, b1_ref, w2_ref, b2_ref, w3_ref, b3_ref,
                out_ref, m_sc, *, seq_len, n_batch, vocab_pad):
    sn = seq_len * n_batch

    # ---- in-kernel embedding gather: one-hot MXU matmul --------------------------
    ids = idx_ref[...]                                               # (S*N, 1) int32
    onehot = (ids == jax.lax.broadcasted_iota(jnp.int32, (sn, vocab_pad), 1)
              ).astype(emb_ref.dtype)                                # (S*N, VP)
    e = jnp.dot(onehot, emb_ref[...],
                preferred_element_type=jnp.float32)                  # (S*N, 64)

    # ---- hoisted input projection: all timesteps in one MXU matmul ---------------
    gx = (jnp.dot(e.astype(wih_ref.dtype), wih_ref[...],
                  preferred_element_type=jnp.float32) + bg_ref[...])  # (S*N, 4*HP)

    whh = whh_ref[...]                           # (64, 4*HP), loop-invariant RHS
    h = h0_ref[...].astype(jnp.float32)          # PyTorch: lstm(x, [prev_h, prev_h])
    c = h0_ref[...].astype(jnp.float32)

    # ---- recurrence: straight-line unroll (S is small & static) ------------------
    # For long sequences chunk time through the grid (BlockSpec (T, N, .) on an
    # 'arbitrary' axis) with (h, c) carried in VMEM scratch.
    for t in range(seq_len):
        # h[:, :H]: padded lanes of h are exactly 0, so K=64 is lossless and halves
        # the RHS rows pushed into the MXU per step vs. the 128-row padded variant.
        g_t = gx[t * n_batch:(t + 1) * n_batch, :] + jnp.dot(
            h[:, :H].astype(whh.dtype), whh, preferred_element_type=jnp.float32)
        # 128-lane-aligned full-vreg gate slices (order i, f, g, o).
        i_g = jax.nn.sigmoid(g_t[:, 0 * HP:1 * HP])
        f_g = jax.nn.sigmoid(g_t[:, 1 * HP:2 * HP])
        g_g = jnp.tanh(g_t[:, 2 * HP:3 * HP])
        o_g = jax.nn.sigmoid(g_t[:, 3 * HP:4 * HP])
        c = f_g * c + i_g * g_g
        h = o_g * jnp.tanh(c)
        # torch.mean(x, dim=1): batch mean per timestep; store is off the h-chain.
        m_sc[pl.ds(t, 1), :] = jnp.mean(h, axis=0, keepdims=True)

    # ---- MLP head: all operands 128-lane padded / lane-dense ---------------------
    m = m_sc[...].astype(w1_ref.dtype)                               # (S, HP)
    z1 = jnp.maximum(
        jnp.dot(m, w1_ref[...], preferred_element_type=jnp.float32) + b1_ref[...],
        0.0)
    z2 = jnp.maximum(
        jnp.dot(z1.astype(w2_ref.dtype), w2_ref[...],
                preferred_element_type=jnp.float32) + b2_ref[...],
        0.0)
    out_ref[...] = (jnp.dot(z2.astype(w3_ref.dtype), w3_ref[...],
                            preferred_element_type=jnp.float32) + b3_ref[...])


def _pad_gate_cols(w_t):
    """(in_dim, 4*H) with H-wide gate blocks -> (in_dim, 4*HP); each gate occupies the
    first H lanes of its own 128-lane block, remaining lanes exactly zero."""
    blocks = [jnp.pad(w_t[:, k * H:(k + 1) * H], ((0, 0), (0, HP - H)))
              for k in range(NG)]
    return jnp.concatenate(blocks, axis=1)


def prepare_params(params, vocab_size):
    """One-time weight preparation (padding / transposes / gate reordering).
    Cache the result and reuse it across calls — none of this is on the hot path."""
    emb, w_ih, w_hh, b_ih, b_hh, prev_h, w1, b1, w2, b2, w3, b3 = params
    cd = COMPUTE_DTYPE
    vp = ((vocab_size + HP - 1) // HP) * HP

    emb_p = jnp.pad(emb, ((0, vp - vocab_size), (0, 0))).astype(cd)      # (VP, 64)
    h0 = jnp.pad(prev_h[0].astype(jnp.float32), ((0, 0), (0, HP - H)))   # (N, 128)

    wih_p = _pad_gate_cols(w_ih.T).astype(cd)                            # (64, 512)
    whh_p = _pad_gate_cols(w_hh.T).astype(cd)                            # (64, 512)
    bg_p = jnp.pad((b_ih + b_hh).reshape(NG, H),
                   ((0, 0), (0, HP - H))).reshape(1, NG * HP).astype(jnp.float32)

    w1_p = jnp.pad(w1.T, ((0, HP - H), (0, HP - H))).astype(cd)          # (128, 128)
    w2_p = jnp.pad(w2.T, ((0, HP - H), (0, HP - H))).astype(cd)          # (128, 128)
    w3_p = jnp.pad(w3.T, ((0, HP - H), (0, HP - 2))).astype(cd)          # (128, 128)
    b1_p = jnp.pad(b1, (0, HP - H)).reshape(1, HP).astype(jnp.float32)
    b2_p = jnp.pad(b2, (0, HP - H)).reshape(1, HP).astype(jnp.float32)
    b3_p = jnp.pad(b3, (0, HP - 2)).reshape(1, HP).astype(jnp.float32)

    return (emb_p, h0, wih_p, whh_p, bg_p, w1_p, b1_p, w2_p, b2_p, w3_p, b3_p)


@jax.jit
def imdb_forward_pallas(x_idx, padded_params):
    """x_idx: int32 (S, N) token ids (time-major, PyTorch LSTM default).
    padded_params: output of prepare_params().  Returns float32 (S, 2)."""
    (emb_p, h0, wih_p, whh_p, bg_p,
     w1_p, b1_p, w2_p, b2_p, w3_p, b3_p) = padded_params
    S, N = x_idx.shape
    VP = emb_p.shape[0]
    SN = S * N

    idx2d = x_idx.reshape(SN, 1).astype(jnp.int32)
    operands = (idx2d, emb_p, h0, wih_p, whh_p, bg_p,
                w1_p, b1_p, w2_p, b2_p, w3_p, b3_p)

    full = lambda i: (0, 0)
    grid_spec = pltpu.PrefetchScalarGridSpec(
        num_scalar_prefetch=0,
        grid=(1,),   # whole forward in one invocation; all operands VMEM-resident
        in_specs=[pl.BlockSpec(op.shape, full) for op in operands],
        out_specs=pl.BlockSpec((S, HP), full),               # lane-dense padded output
        scratch_shapes=[pltpu.VMEM((S, HP), jnp.float32)],   # per-step batch means
    )

    # Advisory cost model so XLA schedules the (jit-fused) reshape/slice around the call.
    flops = (2 * SN * VP * H             # one-hot embedding gather matmul
             + 2 * SN * H * NG * HP      # hoisted input projection
             + 2 * SN * H * NG * HP      # recurrent h @ W_hh^T summed over timesteps
             + 10 * SN * HP              # gate / cell-update elementwise (approx)
             + 3 * 2 * S * HP * HP)      # MLP head
    bytes_accessed = (sum(op.size * op.dtype.itemsize for op in operands)
                      + S * HP * 4)
    cost = pl.CostEstimate(flops=flops,
                           transcendentals=5 * SN * HP,
                           bytes_accessed=bytes_accessed)

    out_padded = pl.pallas_call(
        functools.partial(imdb_kernel, seq_len=S, n_batch=N, vocab_pad=VP),
        out_shape=jax.ShapeDtypeStruct((S, HP), jnp.float32),
        grid_spec=grid_spec,
        compiler_params=pltpu.CompilerParams(
            dimension_semantics=("arbitrary",),
            vmem_limit_bytes=32 * 1024 * 1024),   # explicit budget; safe on v5e/v6e/v7x
        cost_estimate=cost,
    )(*operands)

    return out_padded[:, :2]


def imdb_forward_ref(x_idx, params):
    """Pure-JAX reference mirroring the PyTorch forward for verification."""
    emb, w_ih, w_hh, b_ih, b_hh, prev_h, w1, b1, w2, b2, w3, b3 = params
    e = jnp.take(emb, x_idx, axis=0)                    # (S, N, 64)
    h = prev_h[0]
    c = prev_h[0]
    outs = []
    for t in range(e.shape[0]):
        gates = e[t] @ w_ih.T + b_ih + h @ w_hh.T + b_hh
        i_g = jax.nn.sigmoid(gates[:, 0 * H:1 * H])
        f_g = jax.nn.sigmoid(gates[:, 1 * H:2 * H])
        g_g = jnp.tanh(gates[:, 2 * H:3 * H])
        o_g = jax.nn.sigmoid(gates[:, 3 * H:4 * H])
        c = f_g * c + i_g * g_g
        h = o_g * jnp.tanh(c)
        outs.append(h)
    y = jnp.stack(outs, axis=0)                         # (S, N, 64)
    m = jnp.mean(y, axis=1)                             # torch.mean(x, dim=1)
    z1 = jnp.maximum(m @ w1.T + b1, 0.0)
    z2 = jnp.maximum(z1 @ w2.T + b2, 0.0)
    return z2 @ w3.T + b3


def init_params(key, vocab_size, n_batch):
    ks = jax.random.split(key, 12)
    bound = 1.0 / jnp.sqrt(H)
    u = lambda k, shape: jax.random.uniform(k, shape, jnp.float32, -bound, bound)
    emb = jax.random.normal(ks[0], (vocab_size, H), jnp.float32) * 0.1
    w_ih = u(ks[1], (4 * H, H))
    w_hh = u(ks[2], (4 * H, H))
    b_ih = u(ks[3], (4 * H,))
    b_hh = u(ks[4], (4 * H,))
    prev_h = jax.random.normal(ks[5], (1, n_batch, H), jnp.float32) * 0.1
    w1 = u(ks[6], (H, H))
    b1 = u(ks[7], (H,))
    w2 = u(ks[8], (H, H))
    b2 = u(ks[9], (H,))
    w3 = u(ks[10], (2, H))
    b3 = u(ks[11], (2,))
    return (emb, w_ih, w_hh, b_ih, b_hh, prev_h, w1, b1, w2, b2, w3, b3)


if __name__ == "__main__":
    key = jax.random.PRNGKey(0)
    k_param, k_idx = jax.random.split(key)

    vocab_size = 100
    S, N = 4, 8        # x shape (S, N): dim0 = LSTM time, dim1 = LSTM batch
    params = init_params(k_param, vocab_size, N)
    x_idx = jax.random.randint(k_idx, (S, N), 0, vocab_size, dtype=jnp.int32)

    # One-time param preparation (cached); per-call path is just the jitted pallas_call.
    padded_params = jax.block_until_ready(prepare_params(params, vocab_size))

    out = imdb_forward_pallas(x_idx, padded_params)
    out = jax.block_until_ready(out)

    ref = imdb_forward_ref(x_idx, params)
    assert out.shape == (S, 2), out.shape
    assert jnp.allclose(out, ref, rtol=1e-4, atol=1e-4), (out, ref)

    print("KERNEL_OK")
</pallas_src>

<mosaic_0001>
module attributes {stable_mosaic.version = 11 : i64} {
  func.func @imdb_kernel(%arg0: i32, %arg1: memref<32x1xi32, #tpu.memory_space<vmem>>, %arg2: memref<128x64xf32, #tpu.memory_space<vmem>>, %arg3: memref<8x128xf32, #tpu.memory_space<vmem>>, %arg4: memref<64x512xf32, #tpu.memory_space<vmem>>, %arg5: memref<64x512xf32, #tpu.memory_space<vmem>>, %arg6: memref<1x512xf32, #tpu.memory_space<vmem>>, %arg7: memref<128x128xf32, #tpu.memory_space<vmem>>, %arg8: memref<1x128xf32, #tpu.memory_space<vmem>>, %arg9: memref<128x128xf32, #tpu.memory_space<vmem>>, %arg10: memref<1x128xf32, #tpu.memory_space<vmem>>, %arg11: memref<128x128xf32, #tpu.memory_space<vmem>>, %arg12: memref<1x128xf32, #tpu.memory_space<vmem>>, %arg13: memref<4x128xf32, #tpu.memory_space<vmem>>, %arg14: memref<4x128xf32, #tpu.memory_space<vmem>>) attributes {dimension_semantics = [#tpu.dimension_semantics<arbitrary>], iteration_bounds = array<i64: 1>, scalar_prefetch = 0 : i64, scratch_operands = 1 : i64, tpu.core_type = #tpu.core_type<tc>, window_params = [{pipeline_mode = #tpu.pipeline_mode<synchronous>, transform_indices = @transform_0, window_bounds = array<i64: 32, 1>}, {pipeline_mode = #tpu.pipeline_mode<synchronous>, transform_indices = @transform_1, window_bounds = array<i64: 128, 64>}, {pipeline_mode = #tpu.pipeline_mode<synchronous>, transform_indices = @transform_2, window_bounds = array<i64: 8, 128>}, {pipeline_mode = #tpu.pipeline_mode<synchronous>, transform_indices = @transform_3, window_bounds = array<i64: 64, 512>}, {pipeline_mode = #tpu.pipeline_mode<synchronous>, transform_indices = @transform_4, window_bounds = array<i64: 64, 512>}, {pipeline_mode = #tpu.pipeline_mode<synchronous>, transform_indices = @transform_5, window_bounds = array<i64: 1, 512>}, {pipeline_mode = #tpu.pipeline_mode<synchronous>, transform_indices = @transform_6, window_bounds = array<i64: 128, 128>}, {pipeline_mode = #tpu.pipeline_mode<synchronous>, transform_indices = @transform_7, window_bounds = array<i64: 1, 128>}, {pipeline_mode = #tpu.pipeline_mode<synchronous>, transform_indices = @transform_8, window_bounds = array<i64: 128, 128>}, {pipeline_mode = #tpu.pipeline_mode<synchronous>, transform_indices = @transform_9, window_bounds = array<i64: 1, 128>}, {pipeline_mode = #tpu.pipeline_mode<synchronous>, transform_indices = @transform_10, window_bounds = array<i64: 128, 128>}, {pipeline_mode = #tpu.pipeline_mode<synchronous>, transform_indices = @transform_11, window_bounds = array<i64: 1, 128>}, {pipeline_mode = #tpu.pipeline_mode<synchronous>, transform_indices = @transform_12, window_bounds = array<i64: 4, 128>}]} {
    %c0 = arith.constant 0 : index
    %c0_0 = arith.constant 0 : index
    %0 = vector.load %arg1[%c0, %c0_0] : memref<32x1xi32, #tpu.memory_space<vmem>>, vector<32x1xi32>
    %1 = tpu.iota {dimensions = array<i32: 1>} : vector<32x128xi32>
    %2 = vector.broadcast %0 : vector<32x1xi32> to vector<32x128xi32>
    %3 = arith.cmpi eq, %2, %1 : vector<32x128xi32>
    %4 = arith.extui %3 : vector<32x128xi1> to vector<32x128xi32>
    %5 = arith.sitofp %4 : vector<32x128xi32> to vector<32x128xf32>
    %c0_1 = arith.constant 0 : index
    %c0_2 = arith.constant 0 : index
    %6 = vector.load %arg2[%c0_1, %c0_2] : memref<128x64xf32, #tpu.memory_space<vmem>>, vector<128x64xf32>
    %cst = arith.constant dense<0.000000e+00> : vector<32x64xf32>
    %7 = tpu.matmul %5, %6, %cst {dimension_numbers = #tpu.dot_dimension_numbers<[1], [0], [0], [1], [0, 0, 1, 1], [], []>} : vector<32x128xf32>, vector<128x64xf32>, vector<32x64xf32> -> vector<32x64xf32>
    %c0_3 = arith.constant 0 : index
    %c0_4 = arith.constant 0 : index
    %8 = vector.load %arg4[%c0_3, %c0_4] : memref<64x512xf32, #tpu.memory_space<vmem>>, vector<64x512xf32>
    %cst_5 = arith.constant dense<0.000000e+00> : vector<32x512xf32>
    %9 = tpu.matmul %7, %8, %cst_5 {dimension_numbers = #tpu.dot_dimension_numbers<[1], [0], [0], [1], [0, 0, 1, 1], [], []>} : vector<32x64xf32>, vector<64x512xf32>, vector<32x512xf32> -> vector<32x512xf32>
    %c0_6 = arith.constant 0 : index
    %c0_7 = arith.constant 0 : index
    %10 = vector.load %arg6[%c0_6, %c0_7] : memref<1x512xf32, #tpu.memory_space<vmem>>, vector<1x512xf32>
    %11 = vector.broadcast %10 : vector<1x512xf32> to vector<32x512xf32>
    %12 = arith.addf %9, %11 : vector<32x512xf32>
    %c0_8 = arith.constant 0 : index
    %c0_9 = arith.constant 0 : index
    %13 = vector.load %arg5[%c0_8, %c0_9] : memref<64x512xf32, #tpu.memory_space<vmem>>, vector<64x512xf32>
    %c0_10 = arith.constant 0 : index
    %c0_11 = arith.constant 0 : index
    %14 = vector.load %arg3[%c0_10, %c0_11] : memref<8x128xf32, #tpu.memory_space<vmem>>, vector<8x128xf32>
    %c0_12 = arith.constant 0 : index
    %c0_13 = arith.constant 0 : index
    %15 = vector.load %arg3[%c0_12, %c0_13] : memref<8x128xf32, #tpu.memory_space<vmem>>, vector<8x128xf32>
    %16 = vector.extract_strided_slice %12 {offsets = [0, 0], sizes = [8, 512], strides = [1, 1]} : vector<32x512xf32> to vector<8x512xf32>
    %17 = vector.extract_strided_slice %14 {offsets = [0, 0], sizes = [8, 64], strides = [1, 1]} : vector<8x128xf32> to vector<8x64xf32>
    %cst_14 = arith.constant dense<0.000000e+00> : vector<8x512xf32>
    %18 = tpu.matmul %17, %13, %cst_14 {dimension_numbers = #tpu.dot_dimension_numbers<[1], [0], [0], [1], [0, 0, 1, 1], [], []>} : vector<8x64xf32>, vector<64x512xf32>, vector<8x512xf32> -> vector<8x512xf32>
    %19 = arith.addf %16, %18 : vector<8x512xf32>
    %20 = vector.extract_strided_slice %19 {offsets = [0, 0], sizes = [8, 128], strides = [1, 1]} : vector<8x512xf32> to vector<8x128xf32>
    %21 = arith.negf %20 : vector<8x128xf32>
    %22 = math.exp %21 : vector<8x128xf32>
    %cst_15 = arith.constant 1.000000e+00 : f32
    %23 = vector.broadcast %cst_15 : f32 to vector<8x128xf32>
    %24 = arith.addf %23, %22 : vector<8x128xf32>
    %25 = arith.divf %23, %24 : vector<8x128xf32>
    %26 = vector.extract_strided_slice %19 {offsets = [0, 128], sizes = [8, 128], strides = [1, 1]} : vector<8x512xf32> to vector<8x128xf32>
    %27 = arith.negf %26 : vector<8x128xf32>
    %28 = math.exp %27 : vector<8x128xf32>
    %cst_16 = arith.constant 1.000000e+00 : f32
    %29 = vector.broadcast %cst_16 : f32 to vector<8x128xf32>
    %30 = arith.addf %29, %28 : vector<8x128xf32>
    %31 = arith.divf %29, %30 : vector<8x128xf32>
    %32 = vector.extract_strided_slice %19 {offsets = [0, 256], sizes = [8, 128], strides = [1, 1]} : vector<8x512xf32> to vector<8x128xf32>
    %33 = math.tanh %32 : vector<8x128xf32>
    %34 = vector.extract_strided_slice %19 {offsets = [0, 384], sizes = [8, 128], strides = [1, 1]} : vector<8x512xf32> to vector<8x128xf32>
    %35 = arith.negf %34 : vector<8x128xf32>
    %36 = math.exp %35 : vector<8x128xf32>
    %cst_17 = arith.constant 1.000000e+00 : f32
    %37 = vector.broadcast %cst_17 : f32 to vector<8x128xf32>
    %38 = arith.addf %37, %36 : vector<8x128xf32>
    %39 = arith.divf %37, %38 : vector<8x128xf32>
    %40 = arith.mulf %31, %15 : vector<8x128xf32>
    %41 = arith.mulf %25, %33 : vector<8x128xf32>
    %42 = arith.addf %40, %41 : vector<8x128xf32>
    %43 = math.tanh %42 : vector<8x128xf32>
    %44 = arith.mulf %39, %43 : vector<8x128xf32>
    %cst_18 = arith.constant dense<0.000000e+00> : vector<128xf32>
    %45 = vector.multi_reduction <add>, %44, %cst_18 [0] : vector<8x128xf32> to vector<128xf32>
    %46 = vector.shape_cast %45 : vector<128xf32> to vector<1x128xf32>
    %cst_19 = arith.constant 8.000000e+00 : f32
    %47 = vector.broadcast %cst_19 : f32 to vector<1x128xf32>
    %48 = arith.divf %46, %47 : vector<1x128xf32>
    %c0_20 = arith.constant 0 : index
    %c0_21 = arith.constant 0 : index
    %49 = vector.load %arg14[%c0_20, %c0_21] : memref<4x128xf32, #tpu.memory_space<vmem>>, vector<1x128xf32>
    tpu.vector_store %arg14[%c0_20, %c0_21], %48 {strides = array<i32>} : memref<4x128xf32, #tpu.memory_space<vmem>>, vector<1x128xf32>,
    %50 = vector.extract_strided_slice %12 {offsets = [8, 0], sizes = [8, 512], strides = [1, 1]} : vector<32x512xf32> to vector<8x512xf32>
    %51 = vector.extract_strided_slice %44 {offsets = [0, 0], sizes = [8, 64], strides = [1, 1]} : vector<8x128xf32> to vector<8x64xf32>
    %cst_22 = arith.constant dense<0.000000e+00> : vector<8x512xf32>
    %52 = tpu.matmul %51, %13, %cst_22 {dimension_numbers = #tpu.dot_dimension_numbers<[1], [0], [0], [1], [0, 0, 1, 1], [], []>} : vector<8x64xf32>, vector<64x512xf32>, vector<8x512xf32> -> vector<8x512xf32>
    %53 = arith.addf %50, %52 : vector<8x512xf32>
    %54 = vector.extract_strided_slice %53 {offsets = [0, 0], sizes = [8, 128], strides = [1, 1]} : vector<8x512xf32> to vector<8x128xf32>
    %55 = arith.negf %54 : vector<8x128xf32>
    %56 = math.exp %55 : vector<8x128xf32>
    %cst_23 = arith.constant 1.000000e+00 : f32
    %57 = vector.broadcast %cst_23 : f32 to vector<8x128xf32>
    %58 = arith.addf %57, %56 : vector<8x128xf32>
    %59 = arith.divf %57, %58 : vector<8x128xf32>
    %60 = vector.extract_strided_slice %53 {offsets = [0, 128], sizes = [8, 128], strides = [1, 1]} : vector<8x512xf32> to vector<8x128xf32>
    %61 = arith.negf %60 : vector<8x128xf32>
    %62 = math.exp %61 : vector<8x128xf32>
    %cst_24 = arith.constant 1.000000e+00 : f32
    %63 = vector.broadcast %cst_24 : f32 to vector<8x128xf32>
    %64 = arith.addf %63, %62 : vector<8x128xf32>
    %65 = arith.divf %63, %64 : vector<8x128xf32>
    %66 = vector.extract_strided_slice %53 {offsets = [0, 256], sizes = [8, 128], strides = [1, 1]} : vector<8x512xf32> to vector<8x128xf32>
    %67 = math.tanh %66 : vector<8x128xf32>
    %68 = vector.extract_strided_slice %53 {offsets = [0, 384], sizes = [8, 128], strides = [1, 1]} : vector<8x512xf32> to vector<8x128xf32>
    %69 = arith.negf %68 : vector<8x128xf32>
    %70 = math.exp %69 : vector<8x128xf32>
    %cst_25 = arith.constant 1.000000e+00 : f32
    %71 = vector.broadcast %cst_25 : f32 to vector<8x128xf32>
    %72 = arith.addf %71, %70 : vector<8x128xf32>
    %73 = arith.divf %71, %72 : vector<8x128xf32>
    %74 = arith.mulf %65, %42 : vector<8x128xf32>
    %75 = arith.mulf %59, %67 : vector<8x128xf32>
    %76 = arith.addf %74, %75 : vector<8x128xf32>
    %77 = math.tanh %76 : vector<8x128xf32>
    %78 = arith.mulf %73, %77 : vector<8x128xf32>
    %cst_26 = arith.constant dense<0.000000e+00> : vector<128xf32>
    %79 = vector.multi_reduction <add>, %78, %cst_26 [0] : vector<8x128xf32> to vector<128xf32>
    %80 = vector.shape_cast %79 : vector<128xf32> to vector<1x128xf32>
    %cst_27 = arith.constant 8.000000e+00 : f32
    %81 = vector.broadcast %cst_27 : f32 to vector<1x128xf32>
    %82 = arith.divf %80, %81 : vector<1x128xf32>
    %c1 = arith.constant 1 : index
    %c0_28 = arith.constant 0 : index
    %83 = vector.load %arg14[%c1, %c0_28] : memref<4x128xf32, #tpu.memory_space<vmem>>, vector<1x128xf32>
    tpu.vector_store %arg14[%c1, %c0_28], %82 {strides = array<i32>} : memref<4x128xf32, #tpu.memory_space<vmem>>, vector<1x128xf32>,
    %84 = vector.extract_strided_slice %12 {offsets = [16, 0], sizes = [8, 512], strides = [1, 1]} : vector<32x512xf32> to vector<8x512xf32>
    %85 = vector.extract_strided_slice %78 {offsets = [0, 0], sizes = [8, 64], strides = [1, 1]} : vector<8x128xf32> to vector<8x64xf32>
    %cst_29 = arith.constant dense<0.000000e+00> : vector<8x512xf32>
    %86 = tpu.matmul %85, %13, %cst_29 {dimension_numbers = #tpu.dot_dimension_numbers<[1], [0], [0], [1], [0, 0, 1, 1], [], []>} : vector<8x64xf32>, vector<64x512xf32>, vector<8x512xf32> -> vector<8x512xf32>
    %87 = arith.addf %84, %86 : vector<8x512xf32>
    %88 = vector.extract_strided_slice %87 {offsets = [0, 0], sizes = [8, 128], strides = [1, 1]} : vector<8x512xf32> to vector<8x128xf32>
    %89 = arith.negf %88 : vector<8x128xf32>
    %90 = math.exp %89 : vector<8x128xf32>
    %cst_30 = arith.constant 1.000000e+00 : f32
    %91 = vector.broadcast %cst_30 : f32 to vector<8x128xf32>
    %92 = arith.addf %91, %90 : vector<8x128xf32>
    %93 = arith.divf %91, %92 : vector<8x128xf32>
    %94 = vector.extract_strided_slice %87 {offsets = [0, 128], sizes = [8, 128], strides = [1, 1]} : vector<8x512xf32> to vector<8x128xf32>
    %95 = arith.negf %94 : vector<8x128xf32>
    %96 = math.exp %95 : vector<8x128xf32>
    %cst_31 = arith.constant 1.000000e+00 : f32
    %97 = vector.broadcast %cst_31 : f32 to vector<8x128xf32>
    %98 = arith.addf %97, %96 : vector<8x128xf32>
    %99 = arith.divf %97, %98 : vector<8x128xf32>
    %100 = vector.extract_strided_slice %87 {offsets = [0, 256], sizes = [8, 128], strides = [1, 1]} : vector<8x512xf32> to vector<8x128xf32>
    %101 = math.tanh %100 : vector<8x128xf32>
    %102 = vector.extract_strided_slice %87 {offsets = [0, 384], sizes = [8, 128], strides = [1, 1]} : vector<8x512xf32> to vector<8x128xf32>
    %103 = arith.negf %102 : vector<8x128xf32>
    %104 = math.exp %103 : vector<8x128xf32>
    %cst_32 = arith.constant 1.000000e+00 : f32
    %105 = vector.broadcast %cst_32 : f32 to vector<8x128xf32>
    %106 = arith.addf %105, %104 : vector<8x128xf32>
    %107 = arith.divf %105, %106 : vector<8x128xf32>
    %108 = arith.mulf %99, %76 : vector<8x128xf32>
    %109 = arith.mulf %93, %101 : vector<8x128xf32>
    %110 = arith.addf %108, %109 : vector<8x128xf32>
    %111 = math.tanh %110 : vector<8x128xf32>
    %112 = arith.mulf %107, %111 : vector<8x128xf32>
    %cst_33 = arith.constant dense<0.000000e+00> : vector<128xf32>
    %113 = vector.multi_reduction <add>, %112, %cst_33 [0] : vector<8x128xf32> to vector<128xf32>
    %114 = vector.shape_cast %113 : vector<128xf32> to vector<1x128xf32>
    %cst_34 = arith.constant 8.000000e+00 : f32
    %115 = vector.broadcast %cst_34 : f32 to vector<1x128xf32>
    %116 = arith.divf %114, %115 : vector<1x128xf32>
    %c2 = arith.constant 2 : index
    %c0_35 = arith.constant 0 : index
    %117 = vector.load %arg14[%c2, %c0_35] : memref<4x128xf32, #tpu.memory_space<vmem>>, vector<1x128xf32>
    tpu.vector_store %arg14[%c2, %c0_35], %116 {strides = array<i32>} : memref<4x128xf32, #tpu.memory_space<vmem>>, vector<1x128xf32>,
    %118 = vector.extract_strided_slice %12 {offsets = [24, 0], sizes = [8, 512], strides = [1, 1]} : vector<32x512xf32> to vector<8x512xf32>
    %119 = vector.extract_strided_slice %112 {offsets = [0, 0], sizes = [8, 64], strides = [1, 1]} : vector<8x128xf32> to vector<8x64xf32>
    %cst_36 = arith.constant dense<0.000000e+00> : vector<8x512xf32>
    %120 = tpu.matmul %119, %13, %cst_36 {dimension_numbers = #tpu.dot_dimension_numbers<[1], [0], [0], [1], [0, 0, 1, 1], [], []>} : vector<8x64xf32>, vector<64x512xf32>, vector<8x512xf32> -> vector<8x512xf32>
    %121 = arith.addf %118, %120 : vector<8x512xf32>
    %122 = vector.extract_strided_slice %121 {offsets = [0, 0], sizes = [8, 128], strides = [1, 1]} : vector<8x512xf32> to vector<8x128xf32>
    %123 = arith.negf %122 : vector<8x128xf32>
    %124 = math.exp %123 : vector<8x128xf32>
    %cst_37 = arith.constant 1.000000e+00 : f32
    %125 = vector.broadcast %cst_37 : f32 to vector<8x128xf32>
    %126 = arith.addf %125, %124 : vector<8x128xf32>
    %127 = arith.divf %125, %126 : vector<8x128xf32>
    %128 = vector.extract_strided_slice %121 {offsets = [0, 128], sizes = [8, 128], strides = [1, 1]} : vector<8x512xf32> to vector<8x128xf32>
    %129 = arith.negf %128 : vector<8x128xf32>
    %130 = math.exp %129 : vector<8x128xf32>
    %cst_38 = arith.constant 1.000000e+00 : f32
    %131 = vector.broadcast %cst_38 : f32 to vector<8x128xf32>
    %132 = arith.addf %131, %130 : vector<8x128xf32>
    %133 = arith.divf %131, %132 : vector<8x128xf32>
    %134 = vector.extract_strided_slice %121 {offsets = [0, 256], sizes = [8, 128], strides = [1, 1]} : vector<8x512xf32> to vector<8x128xf32>
    %135 = math.tanh %134 : vector<8x128xf32>
    %136 = vector.extract_strided_slice %121 {offsets = [0, 384], sizes = [8, 128], strides = [1, 1]} : vector<8x512xf32> to vector<8x128xf32>
    %137 = arith.negf %136 : vector<8x128xf32>
    %138 = math.exp %137 : vector<8x128xf32>
    %cst_39 = arith.constant 1.000000e+00 : f32
    %139 = vector.broadcast %cst_39 : f32 to vector<8x128xf32>
    %140 = arith.addf %139, %138 : vector<8x128xf32>
    %141 = arith.divf %139, %140 : vector<8x128xf32>
    %142 = arith.mulf %133, %110 : vector<8x128xf32>
    %143 = arith.mulf %127, %135 : vector<8x128xf32>
    %144 = arith.addf %142, %143 : vector<8x128xf32>
    %145 = math.tanh %144 : vector<8x128xf32>
    %146 = arith.mulf %141, %145 : vector<8x128xf32>
    %cst_40 = arith.constant dense<0.000000e+00> : vector<128xf32>
    %147 = vector.multi_reduction <add>, %146, %cst_40 [0] : vector<8x128xf32> to vector<128xf32>
    %148 = vector.shape_cast %147 : vector<128xf32> to vector<1x128xf32>
    %cst_41 = arith.constant 8.000000e+00 : f32
    %149 = vector.broadcast %cst_41 : f32 to vector<1x128xf32>
    %150 = arith.divf %148, %149 : vector<1x128xf32>
    %c3 = arith.constant 3 : index
    %c0_42 = arith.constant 0 : index
    %151 = vector.load %arg14[%c3, %c0_42] : memref<4x128xf32, #tpu.memory_space<vmem>>, vector<1x128xf32>
    tpu.vector_store %arg14[%c3, %c0_42], %150 {strides = array<i32>} : memref<4x128xf32, #tpu.memory_space<vmem>>, vector<1x128xf32>,
    %c0_43 = arith.constant 0 : index
    %c0_44 = arith.constant 0 : index
    %152 = vector.load %arg14[%c0_43, %c0_44] : memref<4x128xf32, #tpu.memory_space<vmem>>, vector<4x128xf32>
    %c0_45 = arith.constant 0 : index
    %c0_46 = arith.constant 0 : index
    %153 = vector.load %arg7[%c0_45, %c0_46] : memref<128x128xf32, #tpu.memory_space<vmem>>, vector<128x128xf32>
    %cst_47 = arith.constant dense<0.000000e+00> : vector<4x128xf32>
    %154 = tpu.matmul %152, %153, %cst_47 {dimension_numbers = #tpu.dot_dimension_numbers<[1], [0], [0], [1], [0, 0, 1, 1], [], []>} : vector<4x128xf32>, vector<128x128xf32>, vector<4x128xf32> -> vector<4x128xf32>
    %c0_48 = arith.constant 0 : index
    %c0_49 = arith.constant 0 : index
    %155 = vector.load %arg8[%c0_48, %c0_49] : memref<1x128xf32, #tpu.memory_space<vmem>>, vector<1x128xf32>
    %156 = vector.broadcast %155 : vector<1x128xf32> to vector<4x128xf32>
    %157 = arith.addf %154, %156 : vector<4x128xf32>
    %cst_50 = arith.constant 0.000000e+00 : f32
    %158 = vector.broadcast %cst_50 : f32 to vector<4x128xf32>
    %159 = arith.maximumf %157, %158 : vector<4x128xf32>
    %c0_51 = arith.constant 0 : index
    %c0_52 = arith.constant 0 : index
    %160 = vector.load %arg9[%c0_51, %c0_52] : memref<128x128xf32, #tpu.memory_space<vmem>>, vector<128x128xf32>
    %cst_53 = arith.constant dense<0.000000e+00> : vector<4x128xf32>
    %161 = tpu.matmul %159, %160, %cst_53 {dimension_numbers = #tpu.dot_dimension_numbers<[1], [0], [0], [1], [0, 0, 1, 1], [], []>} : vector<4x128xf32>, vector<128x128xf32>, vector<4x128xf32> -> vector<4x128xf32>
    %c0_54 = arith.constant 0 : index
    %c0_55 = arith.constant 0 : index
    %162 = vector.load %arg10[%c0_54, %c0_55] : memref<1x128xf32, #tpu.memory_space<vmem>>, vector<1x128xf32>
    %163 = vector.broadcast %162 : vector<1x128xf32> to vector<4x128xf32>
    %164 = arith.addf %161, %163 : vector<4x128xf32>
    %cst_56 = arith.constant 0.000000e+00 : f32
    %165 = vector.broadcast %cst_56 : f32 to vector<4x128xf32>
    %166 = arith.maximumf %164, %165 : vector<4x128xf32>
    %c0_57 = arith.constant 0 : index
    %c0_58 = arith.constant 0 : index
    %167 = vector.load %arg11[%c0_57, %c0_58] : memref<128x128xf32, #tpu.memory_space<vmem>>, vector<128x128xf32>
    %cst_59 = arith.constant dense<0.000000e+00> : vector<4x128xf32>
    %168 = tpu.matmul %166, %167, %cst_59 {dimension_numbers = #tpu.dot_dimension_numbers<[1], [0], [0], [1], [0, 0, 1, 1], [], []>} : vector<4x128xf32>, vector<128x128xf32>, vector<4x128xf32> -> vector<4x128xf32>
    %c0_60 = arith.constant 0 : index
    %c0_61 = arith.constant 0 : index
    %169 = vector.load %arg12[%c0_60, %c0_61] : memref<1x128xf32, #tpu.memory_space<vmem>>, vector<1x128xf32>
    %170 = vector.broadcast %169 : vector<1x128xf32> to vector<4x128xf32>
    %171 = arith.addf %168, %170 : vector<4x128xf32>
    %c0_62 = arith.constant 0 : index
    %c0_63 = arith.constant 0 : index
    %172 = vector.load %arg13[%c0_62, %c0_63] : memref<4x128xf32, #tpu.memory_space<vmem>>, vector<4x128xf32>
    tpu.vector_store %arg13[%c0_62, %c0_63], %171 {strides = array<i32>} : memref<4x128xf32, #tpu.memory_space<vmem>>, vector<4x128xf32>,
    return
  }
  func.func @transform_0(%arg0: i32) -> (i32, i32) {
    %c0_i32 = arith.constant 0 : i32
    %c0_i32_0 = arith.constant 0 : i32
    %c0_i32_1 = arith.constant 0 : i32
    return %c0_i32, %c0_i32_0 : i32, i32
  }
  func.func @transform_1(%arg0: i32) -> (i32, i32) {
    %c0_i32 = arith.constant 0 : i32
    %c0_i32_0 = arith.constant 0 : i32
    %c0_i32_1 = arith.constant 0 : i32
    return %c0_i32, %c0_i32_0 : i32, i32
  }
  func.func @transform_2(%arg0: i32) -> (i32, i32) {
    %c0_i32 = arith.constant 0 : i32
    %c0_i32_0 = arith.constant 0 : i32
    %c0_i32_1 = arith.constant 0 : i32
    return %c0_i32, %c0_i32_0 : i32, i32
  }
  func.func @transform_3(%arg0: i32) -> (i32, i32) {
    %c0_i32 = arith.constant 0 : i32
    %c0_i32_0 = arith.constant 0 : i32
    %c0_i32_1 = arith.constant 0 : i32
    return %c0_i32, %c0_i32_0 : i32, i32
  }
  func.func @transform_4(%arg0: i32) -> (i32, i32) {
    %c0_i32 = arith.constant 0 : i32
    %c0_i32_0 = arith.constant 0 : i32
    %c0_i32_1 = arith.constant 0 : i32
    return %c0_i32, %c0_i32_0 : i32, i32
  }
  func.func @transform_5(%arg0: i32) -> (i32, i32) {
    %c0_i32 = arith.constant 0 : i32
    %c0_i32_0 = arith.constant 0 : i32
    %c0_i32_1 = arith.constant 0 : i32
    return %c0_i32, %c0_i32_0 : i32, i32
  }
  func.func @transform_6(%arg0: i32) -> (i32, i32) {
    %c0_i32 = arith.constant 0 : i32
    %c0_i32_0 = arith.constant 0 : i32
    %c0_i32_1 = arith.constant 0 : i32
    return %c0_i32, %c0_i32_0 : i32, i32
  }
  func.func @transform_7(%arg0: i32) -> (i32, i32) {
    %c0_i32 = arith.constant 0 : i32
    %c0_i32_0 = arith.constant 0 : i32
    %c0_i32_1 = arith.constant 0 : i32
    return %c0_i32, %c0_i32_0 : i32, i32
  }
  func.func @transform_8(%arg0: i32) -> (i32, i32) {
    %c0_i32 = arith.constant 0 : i32
    %c0_i32_0 = arith.constant 0 : i32
    %c0_i32_1 = arith.constant 0 : i32
    return %c0_i32, %c0_i32_0 : i32, i32
  }
  func.func @transform_9(%arg0: i32) -> (i32, i32) {
    %c0_i32 = arith.constant 0 : i32
    %c0_i32_0 = arith.constant 0 : i32
    %c0_i32_1 = arith.constant 0 : i32
    return %c0_i32, %c0_i32_0 : i32, i32
  }
  func.func @transform_10(%arg0: i32) -> (i32, i32) {
    %c0_i32 = arith.constant 0 : i32
    %c0_i32_0 = arith.constant 0 : i32
    %c0_i32_1 = arith.constant 0 : i32
    return %c0_i32, %c0_i32_0 : i32, i32
  }
  func.func @transform_11(%arg0: i32) -> (i32, i32) {
    %c0_i32 = arith.constant 0 : i32
    %c0_i32_0 = arith.constant 0 : i32
    %c0_i32_1 = arith.constant 0 : i32
    return %c0_i32, %c0_i32_0 : i32, i32
  }
  func.func @transform_12(%arg0: i32) -> (i32, i32) {
    %c0_i32 = arith.constant 0 : i32
    %c0_i32_0 = arith.constant 0 : i32
    %c0_i32_1 = arith.constant 0 : i32
    return %c0_i32, %c0_i32_0 : i32, i32
  }
}

</mosaic_0001>

<llo_original>
// kernel: imdb_forward_pallas.1
$region0: #{imdb_forward_pallas.1}
  #allocation0 [shape = 'u32[]', space=smem, size = 0x4, offset = 0x4, fixed_abs, tag = 'smem constant byte address 0x4 - core index']
  #allocation1 [shape = 'u32[72,128]{1,0:T(1,128)}', space=vmem, size = 0x9000, scoped, tag = 'internal scratch']
  #allocation2 [shape = 'f32[4,128]{1,0:T(4,128)}', space=vmem, size = 0x800, scoped, tag = 'scratch operand']
  %s0 = inlined_call_operand.vmem [shape: s32[32,1], index: 0, kind: input, shape index: {}]
  %s1 = inlined_call_operand.vmem [shape: f32[128,64], index: 1, kind: input, shape index: {}]
  %s2 = inlined_call_operand.vmem [shape: f32[8,128], index: 2, kind: input, shape index: {}]
  %s3 = inlined_call_operand.hbm [shape: f32[64,512], index: 3, kind: input, shape index: {}]
  %s4 = inlined_call_operand.hbm [shape: f32[64,512], index: 4, kind: input, shape index: {}]
  %s5 = inlined_call_operand.vmem [shape: f32[1,512], index: 5, kind: input, shape index: {}]
  %s6 = inlined_call_operand.vmem [shape: f32[128,128], index: 6, kind: input, shape index: {}]
  %s7 = inlined_call_operand.vmem [shape: f32[1,128], index: 7, kind: input, shape index: {}]
  %s8 = inlined_call_operand.hbm [shape: f32[128,128], index: 8, kind: input, shape index: {}]
  %s9 = inlined_call_operand.vmem [shape: f32[1,128], index: 9, kind: input, shape index: {}]
  %s10 = inlined_call_operand.hbm [shape: f32[128,128], index: 10, kind: input, shape index: {}]
  %s11 = inlined_call_operand.vmem [shape: f32[1,128], index: 11, kind: input, shape index: {}]
  %s12 = inlined_call_operand.vmem [shape: f32[4,128], index: 12, kind: output, shape index: {}]
  %s13 = sld [smem:[#allocation0]]
  $region74: #{imdb_forward_pallas.1} parent=0
    _
  %s15 = ssub.s32 1, %s13
  %s16 = scalar_select 0, %s15, %s13
  $region1: #{imdb_forward_pallas.1} parent=0
    #allocation3 [shape = 'u8[131072]{0}', space=vmem, size = 0x20000, scoped, tag = 'input window, operand 3, single buffered']
    #allocation4 [shape = 's32[1]{0}', space=sflag, size = 0x4, scoped, tag = 'scoped memory for imdb_forward_pallas.1']
    #allocation5 [shape = 'u8[131072]{0}', space=vmem, size = 0x20000, scoped, tag = 'input window, operand 4, single buffered']
    #allocation6 [shape = 's32[1]{0}', space=sflag, size = 0x4, scoped, tag = 'scoped memory for imdb_forward_pallas.1']
    #allocation7 [shape = 'u8[65536]{0}', space=vmem, size = 0x10000, scoped, tag = 'input window, operand 8, single buffered']
    #allocation8 [shape = 'u8[65536]{0}', space=vmem, size = 0x10000, scoped, tag = 'input window, operand 10, single buffered']
    #allocation9 [shape = 's32[1]{0}', space=sflag, size = 0x4, scoped, tag = 'scoped memory for imdb_forward_pallas.1']
    %17 = vsyncpa [#allocation4], 0
    %18 = vsyncpa [#allocation6], 0
    %19 = vsyncpa [#allocation9], 0
    // Predicated region
    $region2: #{imdb_forward_pallas.1} parent=1 // pred_check
      _
    $region3: #{imdb_forward_pallas.1} parent=1 // pred_check_branch
      %21 = sbr.rel (0) target = $region5
    $region4: #{imdb_forward_pallas.1} parent=1 // pred_region
      _
    $region5: #{imdb_forward_pallas.1} parent=1 // pred_fallthru
      _
    // Predicated region
    $region6: #{imdb_forward_pallas.1} parent=1 // pred_check
      _
    $region7: #{imdb_forward_pallas.1} parent=1 // pred_check_branch
      %23 = sbr.rel (0) target = $region9
    $region8: #{imdb_forward_pallas.1} parent=1 // pred_region
      _
    $region9: #{imdb_forward_pallas.1} parent=1 // pred_fallthru
      _
    // Predicated region
    $region10: #{imdb_forward_pallas.1} parent=1 // pred_check
      _
    $region11: #{imdb_forward_pallas.1} parent=1 // pred_check_branch
      %25 = sbr.rel (0) target = $region13
    $region12: #{imdb_forward_pallas.1} parent=1 // pred_region
      _
    $region13: #{imdb_forward_pallas.1} parent=1 // pred_fallthru
      _
    // Predicated region
    $region14: #{imdb_forward_pallas.1} parent=1 // pred_check
      _
    $region15: #{imdb_forward_pallas.1} parent=1 // pred_check_branch
      %27 = sbr.rel (0) target = $region17
    $region16: #{imdb_forward_pallas.1} parent=1 // pred_region
      %29 = vsyncadd [#allocation4], 0
      %s30 = sshll.u32 %s3, 4
      %s31 = int_to_ptr.hbm [resolvable:$true] %s30
      %s32 = sshll.u32 [#allocation3], 4
      %s33 = int_to_ptr.vmem [resolvable:$true] %s32
      %38 = dma.hbm_to_vmem [thread:$0]  %s31, 4096, %s33, [#allocation4], 512, 512, 32
    $region17: #{imdb_forward_pallas.1} parent=1 // pred_fallthru
      _
    // Predicated region
    $region18: #{imdb_forward_pallas.1} parent=1 // pred_check
      _
    $region19: #{imdb_forward_pallas.1} parent=1 // pred_check_branch
      %40 = sbr.rel (0) target = $region21
    $region20: #{imdb_forward_pallas.1} parent=1 // pred_region
      %42 = vsyncadd [#allocation6], 0
      %s43 = sshll.u32 %s4, 4
      %s44 = int_to_ptr.hbm [resolvable:$true] %s43
      %s45 = sshll.u32 [#allocation5], 4
      %s46 = int_to_ptr.vmem [resolvable:$true] %s45
      %51 = dma.hbm_to_vmem [thread:$0]  %s44, 4096, %s46, [#allocation6], 512, 512, 32
    $region21: #{imdb_forward_pallas.1} parent=1 // pred_fallthru
      _
    // Predicated region
    $region22: #{imdb_forward_pallas.1} parent=1 // pred_check
      _
    $region23: #{imdb_forward_pallas.1} parent=1 // pred_check_branch
      %53 = sbr.rel (0) target = $region25
    $region24: #{imdb_forward_pallas.1} parent=1 // pred_region
      _
    $region25: #{imdb_forward_pallas.1} parent=1 // pred_fallthru
      _
    // Predicated region
    $region26: #{imdb_forward_pallas.1} parent=1 // pred_check
      _
    $region27: #{imdb_forward_pallas.1} parent=1 // pred_check_branch
      %55 = sbr.rel (0) target = $region29
    $region28: #{imdb_forward_pallas.1} parent=1 // pred_region
      _
    $region29: #{imdb_forward_pallas.1} parent=1 // pred_fallthru
      _
    // Predicated region
    $region30: #{imdb_forward_pallas.1} parent=1 // pred_check
      _
    $region31: #{imdb_forward_pallas.1} parent=1 // pred_check_branch
      %57 = sbr.rel (0) target = $region33
    $region32: #{imdb_forward_pallas.1} parent=1 // pred_region
      _
    $region33: #{imdb_forward_pallas.1} parent=1 // pred_fallthru
      _
    // Predicated region
    $region34: #{imdb_forward_pallas.1} parent=1 // pred_check
      _
    $region35: #{imdb_forward_pallas.1} parent=1 // pred_check_branch
      %59 = sbr.rel (0) target = $region37
    $region36: #{imdb_forward_pallas.1} parent=1 // pred_region
      %61 = vsyncadd [#allocation6], 0
      %s62 = sshll.u32 %s8, 4
      %s63 = int_to_ptr.hbm [resolvable:$true] %s62
      %s64 = sshll.u32 [#allocation7], 4
      %s65 = int_to_ptr.vmem [resolvable:$true] %s64
      %70 = dma.hbm_to_vmem [thread:$0]  %s63, 2048, %s65, [#allocation6], 128, 128, 8
    $region37: #{imdb_forward_pallas.1} parent=1 // pred_fallthru
      _
    // Predicated region
    $region38: #{imdb_forward_pallas.1} parent=1 // pred_check
      _
    $region39: #{imdb_forward_pallas.1} parent=1 // pred_check_branch
      %72 = sbr.rel (0) target = $region41
    $region40: #{imdb_forward_pallas.1} parent=1 // pred_region
      _
    $region41: #{imdb_forward_pallas.1} parent=1 // pred_fallthru
      _
    // Predicated region
    $region42: #{imdb_forward_pallas.1} parent=1 // pred_check
      _
    $region43: #{imdb_forward_pallas.1} parent=1 // pred_check_branch
      %74 = sbr.rel (0) target = $region45
    $region44: #{imdb_forward_pallas.1} parent=1 // pred_region
      %76 = vsyncadd [#allocation9], 0
      %s77 = sshll.u32 %s10, 4
      %s78 = int_to_ptr.hbm [resolvable:$true] %s77
      %s79 = sshll.u32 [#allocation8], 4
      %s80 = int_to_ptr.vmem [resolvable:$true] %s79
      %85 = dma.hbm_to_vmem [thread:$0]  %s78, 2048, %s80, [#allocation9], 128, 128, 8
    $region45: #{imdb_forward_pallas.1} parent=1 // pred_fallthru
      _
    // Predicated region
    $region46: #{imdb_forward_pallas.1} parent=1 // pred_check
      _
    $region47: #{imdb_forward_pallas.1} parent=1 // pred_check_branch
      %87 = sbr.rel (0) target = $region49
    $region48: #{imdb_forward_pallas.1} parent=1 // pred_region
      _
    $region49: #{imdb_forward_pallas.1} parent=1 // pred_fallthru
      _
    // Predicated region
    $region50: #{imdb_forward_pallas.1} parent=1 // pred_check
      _
    $region51: #{imdb_forward_pallas.1} parent=1 // pred_check_branch
      %89 = sbr.rel (0) target = $region53
    $region52: #{imdb_forward_pallas.1} parent=1 // pred_region
      %91 = dma.done [#allocation4], 4096
    $region53: #{imdb_forward_pallas.1} parent=1 // pred_fallthru
      _
    // Predicated region
    $region54: #{imdb_forward_pallas.1} parent=1 // pred_check
      _
    $region55: #{imdb_forward_pallas.1} parent=1 // pred_check_branch
      %93 = sbr.rel (0) target = $region57
    $region56: #{imdb_forward_pallas.1} parent=1 // pred_region
      %95 = dma.done [#allocation6], 4096
    $region57: #{imdb_forward_pallas.1} parent=1 // pred_fallthru
      _
    // Predicated region
    $region58: #{imdb_forward_pallas.1} parent=1 // pred_check
      _
    $region59: #{imdb_forward_pallas.1} parent=1 // pred_check_branch
      %97 = sbr.rel (0) target = $region61
    $region60: #{imdb_forward_pallas.1} parent=1 // pred_region
      %99 = dma.done [#allocation6], 2048
    $region61: #{imdb_forward_pallas.1} parent=1 // pred_fallthru
      _
    // Predicated region
    $region62: #{imdb_forward_pallas.1} parent=1 // pred_check
      _
    $region63: #{imdb_forward_pallas.1} parent=1 // pred_check_branch
      %101 = sbr.rel (0) target = $region65
    $region64: #{imdb_forward_pallas.1} parent=1 // pred_region
      %103 = dma.done [#allocation9], 2048
    $region65: #{imdb_forward_pallas.1} parent=1 // pred_fallthru
      _
    %v104 = vld [vmem:[%s0] sm:$0xff]
    %v105 = vld [vmem:[%s0 + $0x8] sm:$0xff]
    %v106 = vld [vmem:[%s0 + $0x10] sm:$0xff]
    %v107 = vld [vmem:[%s0 + $0x18] sm:$0xff]
    %v108 = vlaneseq
    %v109 = vand.u32 %v108, 127
    %110 = vset.pattern.permute.xlu0 0
    %111 = vperm.xlu0 %110, %v104
    %v112 = vpop.permute.xlu0 %111
    %113 = vset.pattern.permute.xlu0 0
    %114 = vperm.xlu0 %113, %v105
    %v115 = vpop.permute.xlu0 %114
    %116 = vset.pattern.permute.xlu0 0
    %117 = vperm.xlu0 %116, %v106
    %v118 = vpop.permute.xlu0 %117
    %119 = vset.pattern.permute.xlu0 0
    %120 = vperm.xlu0 %119, %v107
    %v121 = vpop.permute.xlu0 %120
    %vm122 = vcmp.eq.s32.totalorder %v112, %v109
    %vm123 = vcmp.eq.s32.totalorder %v115, %v109
    %vm124 = vcmp.eq.s32.totalorder %v118, %v109
    %vm125 = vcmp.eq.s32.totalorder %v121, %v109
    %v126 = vsel %vm122, 1, 0
    %v127 = vsel %vm123, 1, 0
    %v128 = vsel %vm124, 1, 0
    %v129 = vsel %vm125, 1, 0
    %v130 = vcvt.s32.f32 %v126
    %v131 = vcvt.s32.f32 %v127
    %v132 = vcvt.s32.f32 %v128
    %v133 = vcvt.s32.f32 %v129
    %v134 = vld [vmem:[%s1] sm:$0xff]
    %v135 = vld [vmem:[%s1 + $0x8] sm:$0xff]
    %v136 = vld [vmem:[%s1 + $0x10] sm:$0xff]
    %v137 = vld [vmem:[%s1 + $0x18] sm:$0xff]
    %v138 = vld [vmem:[%s1 + $0x20] sm:$0xff]
    %v139 = vld [vmem:[%s1 + $0x28] sm:$0xff]
    %v140 = vld [vmem:[%s1 + $0x30] sm:$0xff]
    %v141 = vld [vmem:[%s1 + $0x38] sm:$0xff]
    %v142 = vld [vmem:[%s1 + $0x40] sm:$0xff]
    %v143 = vld [vmem:[%s1 + $0x48] sm:$0xff]
    %v144 = vld [vmem:[%s1 + $0x50] sm:$0xff]
    %v145 = vld [vmem:[%s1 + $0x58] sm:$0xff]
    %v146 = vld [vmem:[%s1 + $0x60] sm:$0xff]
    %v147 = vld [vmem:[%s1 + $0x68] sm:$0xff]
    %v148 = vld [vmem:[%s1 + $0x70] sm:$0xff]
    %v149 = vld [vmem:[%s1 + $0x78] sm:$0xff]
    %150 = vmatpush.msra.mxu0 %v149
    %151 = vmatpush.msra.mxu0 %v148
    %152 = vmatpush.msra.mxu0 %v147
    %153 = vmatpush.msra.mxu0 %v146
    %154 = vmatpush.msra.mxu0 %v145
    %155 = vmatpush.msra.mxu0 %v144
    %156 = vmatpush.msra.mxu0 %v143
    %157 = vmatpush.msra.mxu0 %v142
    %158 = vmatpush.msra.mxu0 %v141
    %159 = vmatpush.msra.mxu0 %v140
    %160 = vmatpush.msra.mxu0 %v139
    %161 = vmatpush.msra.mxu0 %v138
    %162 = vmatpush.msra.mxu0 %v137
    %163 = vmatpush.msra.mxu0 %v136
    %164 = vmatpush.msra.mxu0 %v135
    %165 = vmatpush.msra.mxu0 %v134
    %166 = vmatmul.f32.gmra.mxu0 %v130
    %v167 = vpop.f32.mrf.mxu0
    %v168 = vadd.f32 0.0, %v167
    %169 = vmatmul.f32.gmra.mxu0 %v131
    %v170 = vpop.f32.mrf.mxu0
    %v171 = vadd.f32 0.0, %v170
    %172 = vmatmul.f32.gmra.mxu0 %v132
    %v173 = vpop.f32.mrf.mxu0
    %v174 = vadd.f32 0.0, %v173
    %175 = vmatmul.f32.gmra.mxu0 %v133
    %v176 = vpop.f32.mrf.mxu0
    %v177 = vadd.f32 0.0, %v176
    %178 = vdwg.mxu0
    %v179 = vld [vmem:[#allocation3] sm:$0xff]
    %v180 = vld [vmem:[#allocation3 + $0x8] sm:$0xff]
    %v181 = vld [vmem:[#allocation3 + $0x10] sm:$0xff]
    %v182 = vld [vmem:[#allocation3 + $0x18] sm:$0xff]
    %v183 = vld [vmem:[#allocation3 + $0x20] sm:$0xff]
    %v184 = vld [vmem:[#allocation3 + $0x28] sm:$0xff]
    %v185 = vld [vmem:[#allocation3 + $0x30] sm:$0xff]
    %v186 = vld [vmem:[#allocation3 + $0x38] sm:$0xff]
    %v187 = vld [vmem:[#allocation3 + $0x40] sm:$0xff]
    %v188 = vld [vmem:[#allocation3 + $0x48] sm:$0xff]
    %v189 = vld [vmem:[#allocation3 + $0x50] sm:$0xff]
    %v190 = vld [vmem:[#allocation3 + $0x58] sm:$0xff]
    %v191 = vld [vmem:[#allocation3 + $0x60] sm:$0xff]
    %v192 = vld [vmem:[#allocation3 + $0x68] sm:$0xff]
    %v193 = vld [vmem:[#allocation3 + $0x70] sm:$0xff]
    %v194 = vld [vmem:[#allocation3 + $0x78] sm:$0xff]
    %v195 = vld [vmem:[#allocation3 + $0x80] sm:$0xff]
    %v196 = vld [vmem:[#allocation3 + $0x88] sm:$0xff]
    %v197 = vld [vmem:[#allocation3 + $0x90] sm:$0xff]
    %v198 = vld [vmem:[#allocation3 + $0x98] sm:$0xff]
    %v199 = vld [vmem:[#allocation3 + $0xa0] sm:$0xff]
    %v200 = vld [vmem:[#allocation3 + $0xa8] sm:$0xff]
    %v201 = vld [vmem:[#allocation3 + $0xb0] sm:$0xff]
    %v202 = vld [vmem:[#allocation3 + $0xb8] sm:$0xff]
    %v203 = vld [vmem:[#allocation3 + $0xc0] sm:$0xff]
    %v204 = vld [vmem:[#allocation3 + $0xc8] sm:$0xff]
    %v205 = vld [vmem:[#allocation3 + $0xd0] sm:$0xff]
    %v206 = vld [vmem:[#allocation3 + $0xd8] sm:$0xff]
    %v207 = vld [vmem:[#allocation3 + $0xe0] sm:$0xff]
    %v208 = vld [vmem:[#allocation3 + $0xe8] sm:$0xff]
    %v209 = vld [vmem:[#allocation3 + $0xf0] sm:$0xff]
    %v210 = vld [vmem:[#allocation3 + $0xf8] sm:$0xff]
    %v211 = vld [vmem:[%s5] sm:$0xf]
    %v213 = vperm.slane %v211, 0
    %v214 = vperm.slane %v211, 1
    %v215 = vperm.slane %v211, 2
    %v216 = vperm.slane %v211, 3
    %vm221 = vcmask 523264
    %v223 = vsel %vm221, %v168, 0
    %v226 = vsel %vm221, %v171, 0
    %v229 = vsel %vm221, %v174, 0
    %v232 = vsel %vm221, %v177, 0
    %234 = vmatpush.msra.mxu0 0.0
    %235 = vmatpush.msra.mxu0 0.0
    %236 = vmatpush.msra.mxu0 0.0
    %237 = vmatpush.msra.mxu0 0.0
    %238 = vmatpush.msra.mxu0 0.0
    %239 = vmatpush.msra.mxu0 0.0
    %240 = vmatpush.msra.mxu0 0.0
    %241 = vmatpush.msra.mxu0 0.0
    %242 = vmatpush.msra.mxu0 %v207
    %243 = vmatpush.msra.mxu0 %v203
    %244 = vmatpush.msra.mxu0 %v199
    %245 = vmatpush.msra.mxu0 %v195
    %246 = vmatpush.msra.mxu0 %v191
    %247 = vmatpush.msra.mxu0 %v187
    %248 = vmatpush.msra.mxu0 %v183
    %249 = vmatpush.msra.mxu0 %v179
    %250 = vmatmul.f32.gmra.mxu0 %v223
    %v251 = vpop.f32.mrf.mxu0
    %v252 = vadd.f32 %v213, %v251
    %253 = vmatmul.f32.gmra.mxu0 %v226
    %v254 = vpop.f32.mrf.mxu0
    %v255 = vadd.f32 %v213, %v254
    %256 = vmatmul.f32.gmra.mxu0 %v229
    %v257 = vpop.f32.mrf.mxu0
    %v258 = vadd.f32 %v213, %v257
    %259 = vmatmul.f32.gmra.mxu0 %v232
    %v260 = vpop.f32.mrf.mxu0
    %v261 = vadd.f32 %v213, %v260
    %262 = vdwg.mxu0
    %263 = vmatpush.msra.mxu0 0.0
    %264 = vmatpush.msra.mxu0 0.0
    %265 = vmatpush.msra.mxu0 0.0
    %266 = vmatpush.msra.mxu0 0.0
    %267 = vmatpush.msra.mxu0 0.0
    %268 = vmatpush.msra.mxu0 0.0
    %269 = vmatpush.msra.mxu0 0.0
    %270 = vmatpush.msra.mxu0 0.0
    %271 = vmatpush.msra.mxu0 %v208
    %272 = vmatpush.msra.mxu0 %v204
    %273 = vmatpush.msra.mxu0 %v200
    %274 = vmatpush.msra.mxu0 %v196
    %275 = vmatpush.msra.mxu0 %v192
    %276 = vmatpush.msra.mxu0 %v188
    %277 = vmatpush.msra.mxu0 %v184
    %278 = vmatpush.msra.mxu0 %v180
    %279 = vmatmul.f32.gmra.mxu0 %v223
    %v280 = vpop.f32.mrf.mxu0
    %v281 = vadd.f32 %v214, %v280
    %282 = vmatmul.f32.gmra.mxu0 %v226
    %v283 = vpop.f32.mrf.mxu0
    %v284 = vadd.f32 %v214, %v283
    %285 = vmatmul.f32.gmra.mxu0 %v229
    %v286 = vpop.f32.mrf.mxu0
    %v287 = vadd.f32 %v214, %v286
    %288 = vmatmul.f32.gmra.mxu0 %v232
    %v289 = vpop.f32.mrf.mxu0
    %v290 = vadd.f32 %v214, %v289
    %291 = vdwg.mxu0
    %292 = vmatpush.msra.mxu0 0.0
    %293 = vmatpush.msra.mxu0 0.0
    %294 = vmatpush.msra.mxu0 0.0
    %295 = vmatpush.msra.mxu0 0.0
    %296 = vmatpush.msra.mxu0 0.0
    %297 = vmatpush.msra.mxu0 0.0
    %298 = vmatpush.msra.mxu0 0.0
    %299 = vmatpush.msra.mxu0 0.0
    %300 = vmatpush.msra.mxu0 %v209
    %301 = vmatpush.msra.mxu0 %v205
    %302 = vmatpush.msra.mxu0 %v201
    %303 = vmatpush.msra.mxu0 %v197
    %304 = vmatpush.msra.mxu0 %v193
    %305 = vmatpush.msra.mxu0 %v189
    %306 = vmatpush.msra.mxu0 %v185
    %307 = vmatpush.msra.mxu0 %v181
    %308 = vmatmul.f32.gmra.mxu0 %v223
    %v309 = vpop.f32.mrf.mxu0
    %v310 = vadd.f32 %v215, %v309
    %311 = vmatmul.f32.gmra.mxu0 %v226
    %v312 = vpop.f32.mrf.mxu0
    %v313 = vadd.f32 %v215, %v312
    %314 = vmatmul.f32.gmra.mxu0 %v229
    %v315 = vpop.f32.mrf.mxu0
    %v316 = vadd.f32 %v215, %v315
    %317 = vmatmul.f32.gmra.mxu0 %v232
    %v318 = vpop.f32.mrf.mxu0
    %v319 = vadd.f32 %v215, %v318
    %320 = vdwg.mxu0
    %321 = vmatpush.msra.mxu0 0.0
    %322 = vmatpush.msra.mxu0 0.0
    %323 = vmatpush.msra.mxu0 0.0
    %324 = vmatpush.msra.mxu0 0.0
    %325 = vmatpush.msra.mxu0 0.0
    %326 = vmatpush.msra.mxu0 0.0
    %327 = vmatpush.msra.mxu0 0.0
    %328 = vmatpush.msra.mxu0 0.0
    %329 = vmatpush.msra.mxu0 %v210
    %330 = vmatpush.msra.mxu0 %v206
    %331 = vmatpush.msra.mxu0 %v202
    %332 = vmatpush.msra.mxu0 %v198
    %333 = vmatpush.msra.mxu0 %v194
    %334 = vmatpush.msra.mxu0 %v190
    %335 = vmatpush.msra.mxu0 %v186
    %336 = vmatpush.msra.mxu0 %v182
    %337 = vmatmul.f32.gmra.mxu0 %v223
    %v338 = vpop.f32.mrf.mxu0
    %v339 = vadd.f32 %v216, %v338
    %340 = vmatmul.f32.gmra.mxu0 %v226
    %v341 = vpop.f32.mrf.mxu0
    %v342 = vadd.f32 %v216, %v341
    %343 = vmatmul.f32.gmra.mxu0 %v229
    %v344 = vpop.f32.mrf.mxu0
    %v345 = vadd.f32 %v216, %v344
    %346 = vmatmul.f32.gmra.mxu0 %v232
    %v347 = vpop.f32.mrf.mxu0
    %v348 = vadd.f32 %v216, %v347
    %349 = vdwg.mxu0
    %v350 = vld [vmem:[#allocation5] sm:$0xff]
    %v351 = vld [vmem:[#allocation5 + $0x8] sm:$0xff]
    %v352 = vld [vmem:[#allocation5 + $0x10] sm:$0xff]
    %v353 = vld [vmem:[#allocation5 + $0x18] sm:$0xff]
    %v354 = vld [vmem:[#allocation5 + $0x20] sm:$0xff]
    %v355 = vld [vmem:[#allocation5 + $0x28] sm:$0xff]
    %v356 = vld [vmem:[#allocation5 + $0x30] sm:$0xff]
    %v357 = vld [vmem:[#allocation5 + $0x38] sm:$0xff]
    %v358 = vld [vmem:[#allocation5 + $0x40] sm:$0xff]
    %v359 = vld [vmem:[#allocation5 + $0x48] sm:$0xff]
    %v360 = vld [vmem:[#allocation5 + $0x50] sm:$0xff]
    %v361 = vld [vmem:[#allocation5 + $0x58] sm:$0xff]
    %v362 = vld [vmem:[#allocation5 + $0x60] sm:$0xff]
    %v363 = vld [vmem:[#allocation5 + $0x68] sm:$0xff]
    %v364 = vld [vmem:[#allocation5 + $0x70] sm:$0xff]
    %v365 = vld [vmem:[#allocation5 + $0x78] sm:$0xff]
    %v366 = vld [vmem:[#allocation5 + $0x80] sm:$0xff]
    %v367 = vld [vmem:[#allocation5 + $0x88] sm:$0xff]
    %v368 = vld [vmem:[#allocation5 + $0x90] sm:$0xff]
    %v369 = vld [vmem:[#allocation5 + $0x98] sm:$0xff]
    %v370 = vld [vmem:[#allocation5 + $0xa0] sm:$0xff]
    %v371 = vld [vmem:[#allocation5 + $0xa8] sm:$0xff]
    %v372 = vld [vmem:[#allocation5 + $0xb0] sm:$0xff]
    %v373 = vld [vmem:[#allocation5 + $0xb8] sm:$0xff]
    %v374 = vld [vmem:[#allocation5 + $0xc0] sm:$0xff]
    %v375 = vld [vmem:[#allocation5 + $0xc8] sm:$0xff]
    %v376 = vld [vmem:[#allocation5 + $0xd0] sm:$0xff]
    %v377 = vld [vmem:[#allocation5 + $0xd8] sm:$0xff]
    %v378 = vld [vmem:[#allocation5 + $0xe0] sm:$0xff]
    %v379 = vld [vmem:[#allocation5 + $0xe8] sm:$0xff]
    %v380 = vld [vmem:[#allocation5 + $0xf0] sm:$0xff]
    %v381 = vld [vmem:[#allocation5 + $0xf8] sm:$0xff]
    %v382 = vld [vmem:[%s2] sm:$0xff]
    %v384 = vsel %vm221, %v382, 0
    %386 = vmatpush.msra.mxu0 0.0
    %387 = vmatpush.msra.mxu0 0.0
    %388 = vmatpush.msra.mxu0 0.0
    %389 = vmatpush.msra.mxu0 0.0
    %390 = vmatpush.msra.mxu0 0.0
    %391 = vmatpush.msra.mxu0 0.0
    %392 = vmatpush.msra.mxu0 0.0
    %393 = vmatpush.msra.mxu0 0.0
    %394 = vmatpush.msra.mxu0 %v378
    %395 = vmatpush.msra.mxu0 %v374
    %396 = vmatpush.msra.mxu0 %v370
    %397 = vmatpush.msra.mxu0 %v366
    %398 = vmatpush.msra.mxu0 %v362
    %399 = vmatpush.msra.mxu0 %v358
    %400 = vmatpush.msra.mxu0 %v354
    %401 = vmatpush.msra.mxu0 %v350
    %402 = vmatmul.f32.gmra.mxu0 %v384
    %v403 = vpop.f32.mrf.mxu0
    %v404 = vadd.f32 0.0, %v403
    %405 = vdwg.mxu0
    %406 = vmatpush.msra.mxu0 0.0
    %407 = vmatpush.msra.mxu0 0.0
    %408 = vmatpush.msra.mxu0 0.0
    %409 = vmatpush.msra.mxu0 0.0
    %410 = vmatpush.msra.mxu0 0.0
    %411 = vmatpush.msra.mxu0 0.0
    %412 = vmatpush.msra.mxu0 0.0
    %413 = vmatpush.msra.mxu0 0.0
    %414 = vmatpush.msra.mxu0 %v379
    %415 = vmatpush.msra.mxu0 %v375
    %416 = vmatpush.msra.mxu0 %v371
    %417 = vmatpush.msra.mxu0 %v367
    %418 = vmatpush.msra.mxu0 %v363
    %419 = vmatpush.msra.mxu0 %v359
    %420 = vmatpush.msra.mxu0 %v355
    %421 = vmatpush.msra.mxu0 %v351
    %422 = vmatmul.f32.gmra.mxu0 %v384
    %v423 = vpop.f32.mrf.mxu0
    %v424 = vadd.f32 0.0, %v423
    %425 = vdwg.mxu0
    %426 = vmatpush.msra.mxu0 0.0
    %427 = vmatpush.msra.mxu0 0.0
    %428 = vmatpush.msra.mxu0 0.0
    %429 = vmatpush.msra.mxu0 0.0
    %430 = vmatpush.msra.mxu0 0.0
    %431 = vmatpush.msra.mxu0 0.0
    %432 = vmatpush.msra.mxu0 0.0
    %433 = vmatpush.msra.mxu0 0.0
    %434 = vmatpush.msra.mxu0 %v380
    %435 = vmatpush.msra.mxu0 %v376
    %436 = vmatpush.msra.mxu0 %v372
    %437 = vmatpush.msra.mxu0 %v368
    %438 = vmatpush.msra.mxu0 %v364
    %439 = vmatpush.msra.mxu0 %v360
    %440 = vmatpush.msra.mxu0 %v356
    %441 = vmatpush.msra.mxu0 %v352
    %442 = vmatmul.f32.gmra.mxu0 %v384
    %v443 = vpop.f32.mrf.mxu0
    %v444 = vadd.f32 0.0, %v443
    %445 = vdwg.mxu0
    %446 = vmatpush.msra.mxu0 0.0
    %447 = vmatpush.msra.mxu0 0.0
    %448 = vmatpush.msra.mxu0 0.0
    %449 = vmatpush.msra.mxu0 0.0
    %450 = vmatpush.msra.mxu0 0.0
    %451 = vmatpush.msra.mxu0 0.0
    %452 = vmatpush.msra.mxu0 0.0
    %453 = vmatpush.msra.mxu0 0.0
    %454 = vmatpush.msra.mxu0 %v381
    %455 = vmatpush.msra.mxu0 %v377
    %456 = vmatpush.msra.mxu0 %v373
    %457 = vmatpush.msra.mxu0 %v369
    %458 = vmatpush.msra.mxu0 %v365
    %459 = vmatpush.msra.mxu0 %v361
    %460 = vmatpush.msra.mxu0 %v357
    %461 = vmatpush.msra.mxu0 %v353
    %462 = vmatmul.f32.gmra.mxu0 %v384
    %v463 = vpop.f32.mrf.mxu0
    %v464 = vadd.f32 0.0, %v463
    %465 = vdwg.mxu0
    %v466 = vadd.f32 %v252, %v404
    %v467 = vadd.f32 %v281, %v424
    %v468 = vadd.f32 %v310, %v444
    %v469 = vadd.f32 %v339, %v464
    %v470 = vxor.u32 %v466, 2147483648
    %v471 = vmul.f32 %v470, 1.442695
    %v472 = vpow.pop %v471
    %v473 = vadd.f32 %v472, 1.0
    %v474 = vrcp.pop %v473
    %v475 = vmul.f32 %v473, %v474
    %v476 = vsub.f32 1.0, %v475
    %v477 = vmul.f32 %v474, %v476
    %v478 = vadd.f32 %v474, %v477
    %vm479 = vweird.f32 %v473
    %vm480 = vweird.f32 %v474
    %vm481 = vmor %vm479, %vm480
    %v482 = vsel %vm481, %v474, %v478
    %v483 = vand.u32 2147483647, %v473
    %vm484 = vcmp.eq.f32.partialorder %v483, 8.507059e+37
    %v485 = vand.u32 %v473, 2147483648
    %v486 = vor.u32 1.1754944e-38, %v485
    %v487 = vsel %vm484, %v486, %v482
    %v488 = vmul.f32 1.0, %v487
    %v489 = vxor.u32 %v467, 2147483648
    %v490 = vmul.f32 %v489, 1.442695
    %v491 = vpow.pop %v490
    %v492 = vadd.f32 %v491, 1.0
    %v493 = vrcp.pop %v492
    %v494 = vmul.f32 %v492, %v493
    %v495 = vsub.f32 1.0, %v494
    %v496 = vmul.f32 %v493, %v495
    %v497 = vadd.f32 %v493, %v496
    %vm498 = vweird.f32 %v492
    %vm499 = vweird.f32 %v493
    %vm500 = vmor %vm498, %vm499
    %v501 = vsel %vm500, %v493, %v497
    %v502 = vand.u32 2147483647, %v492
    %vm503 = vcmp.eq.f32.partialorder %v502, 8.507059e+37
    %v504 = vand.u32 %v492, 2147483648
    %v505 = vor.u32 1.1754944e-38, %v504
    %v506 = vsel %vm503, %v505, %v501
    %v507 = vmul.f32 1.0, %v506
    %v508 = vtanh.pop %v468
    %v509 = vxor.u32 %v469, 2147483648
    %v510 = vmul.f32 %v509, 1.442695
    %v511 = vpow.pop %v510
    %v512 = vadd.f32 %v511, 1.0
    %v513 = vrcp.pop %v512
    %v514 = vmul.f32 %v512, %v513
    %v515 = vsub.f32 1.0, %v514
    %v516 = vmul.f32 %v513, %v515
    %v517 = vadd.f32 %v513, %v516
    %vm518 = vweird.f32 %v512
    %vm519 = vweird.f32 %v513
    %vm520 = vmor %vm518, %vm519
    %v521 = vsel %vm520, %v513, %v517
    %v522 = vand.u32 2147483647, %v512
    %vm523 = vcmp.eq.f32.partialorder %v522, 8.507059e+37
    %v524 = vand.u32 %v512, 2147483648
    %v525 = vor.u32 1.1754944e-38, %v524
    %v526 = vsel %vm523, %v525, %v521
    %v527 = vmul.f32 1.0, %v526
    %v528 = vmul.f32 %v507, %v382
    %v529 = vmul.f32 %v488, %v508
    %v530 = vadd.f32 %v528, %v529
    %v531 = vtanh.pop %v530
    %v532 = vmul.f32 %v527, %v531
    %v533 = vrot.slane %v532, 4
    %v534 = vadd.f32 %v532, %v533
    %v535 = vrot.slane %v534, 2
    %v536 = vadd.f32 %v534, %v535
    %v537 = vrot.slane %v536, 1
    %v538 = vadd.f32 %v536, %v537
    %v539 = vrcp.pop 8.0
    %v540 = vmul.f32 8.0, %v539
    %v541 = vsub.f32 1.0, %v540
    %v542 = vmul.f32 %v539, %v541
    %v543 = vadd.f32 %v539, %v542
    %vm544 = vweird.f32 %v539
    %v545 = vsel %vm544, %v539, %v543
    %v546 = vmul.f32 %v538, %v545
    %547 = vst [vmem:[#allocation2] sm:$0x1] %v546
    %v549 = vsel %vm221, %v532, 0
    %551 = vmatpush.msra.mxu0 0.0
    %552 = vmatpush.msra.mxu0 0.0
    %553 = vmatpush.msra.mxu0 0.0
    %554 = vmatpush.msra.mxu0 0.0
    %555 = vmatpush.msra.mxu0 0.0
    %556 = vmatpush.msra.mxu0 0.0
    %557 = vmatpush.msra.mxu0 0.0
    %558 = vmatpush.msra.mxu0 0.0
    %559 = vmatpush.msra.mxu0 %v378
    %560 = vmatpush.msra.mxu0 %v374
    %561 = vmatpush.msra.mxu0 %v370
    %562 = vmatpush.msra.mxu0 %v366
    %563 = vmatpush.msra.mxu0 %v362
    %564 = vmatpush.msra.mxu0 %v358
    %565 = vmatpush.msra.mxu0 %v354
    %566 = vmatpush.msra.mxu0 %v350
    %567 = vmatmul.f32.gmra.mxu0 %v549
    %v568 = vpop.f32.mrf.mxu0
    %v569 = vadd.f32 0.0, %v568
    %570 = vdwg.mxu0
    %571 = vmatpush.msra.mxu0 0.0
    %572 = vmatpush.msra.mxu0 0.0
    %573 = vmatpush.msra.mxu0 0.0
    %574 = vmatpush.msra.mxu0 0.0
    %575 = vmatpush.msra.mxu0 0.0
    %576 = vmatpush.msra.mxu0 0.0
    %577 = vmatpush.msra.mxu0 0.0
    %578 = vmatpush.msra.mxu0 0.0
    %579 = vmatpush.msra.mxu0 %v379
    %580 = vmatpush.msra.mxu0 %v375
    %581 = vmatpush.msra.mxu0 %v371
    %582 = vmatpush.msra.mxu0 %v367
    %583 = vmatpush.msra.mxu0 %v363
    %584 = vmatpush.msra.mxu0 %v359
    %585 = vmatpush.msra.mxu0 %v355
    %586 = vmatpush.msra.mxu0 %v351
    %587 = vmatmul.f32.gmra.mxu0 %v549
    %v588 = vpop.f32.mrf.mxu0
    %v589 = vadd.f32 0.0, %v588
    %590 = vdwg.mxu0
    %591 = vmatpush.msra.mxu0 0.0
    %592 = vmatpush.msra.mxu0 0.0
    %593 = vmatpush.msra.mxu0 0.0
    %594 = vmatpush.msra.mxu0 0.0
    %595 = vmatpush.msra.mxu0 0.0
    %596 = vmatpush.msra.mxu0 0.0
    %597 = vmatpush.msra.mxu0 0.0
    %598 = vmatpush.msra.mxu0 0.0
    %599 = vmatpush.msra.mxu0 %v380
    %600 = vmatpush.msra.mxu0 %v376
    %601 = vmatpush.msra.mxu0 %v372
    %602 = vmatpush.msra.mxu0 %v368
    %603 = vmatpush.msra.mxu0 %v364
    %604 = vmatpush.msra.mxu0 %v360
    %605 = vmatpush.msra.mxu0 %v356
    %606 = vmatpush.msra.mxu0 %v352
    %607 = vmatmul.f32.gmra.mxu0 %v549
    %v608 = vpop.f32.mrf.mxu0
    %v609 = vadd.f32 0.0, %v608
    %610 = vdwg.mxu0
    %611 = vmatpush.msra.mxu0 0.0
    %612 = vmatpush.msra.mxu0 0.0
    %613 = vmatpush.msra.mxu0 0.0
    %614 = vmatpush.msra.mxu0 0.0
    %615 = vmatpush.msra.mxu0 0.0
    %616 = vmatpush.msra.mxu0 0.0
    %617 = vmatpush.msra.mxu0 0.0
    %618 = vmatpush.msra.mxu0 0.0
    %619 = vmatpush.msra.mxu0 %v381
    %620 = vmatpush.msra.mxu0 %v377
    %621 = vmatpush.msra.mxu0 %v373
    %622 = vmatpush.msra.mxu0 %v369
    %623 = vmatpush.msra.mxu0 %v365
    %624 = vmatpush.msra.mxu0 %v361
    %625 = vmatpush.msra.mxu0 %v357
    %626 = vmatpush.msra.mxu0 %v353
    %627 = vmatmul.f32.gmra.mxu0 %v549
    %v628 = vpop.f32.mrf.mxu0
    %v629 = vadd.f32 0.0, %v628
    %630 = vdwg.mxu0
    %v631 = vadd.f32 %v255, %v569
    %v632 = vadd.f32 %v284, %v589
    %v633 = vadd.f32 %v313, %v609
    %v634 = vadd.f32 %v342, %v629
    %v635 = vxor.u32 %v631, 2147483648
    %v636 = vmul.f32 %v635, 1.442695
    %v637 = vpow.pop %v636
    %v638 = vadd.f32 %v637, 1.0
    %v639 = vrcp.pop %v638
    %v640 = vmul.f32 %v638, %v639
    %v641 = vsub.f32 1.0, %v640
    %v642 = vmul.f32 %v639, %v641
    %v643 = vadd.f32 %v639, %v642
    %vm644 = vweird.f32 %v638
    %vm645 = vweird.f32 %v639
    %vm646 = vmor %vm644, %vm645
    %v647 = vsel %vm646, %v639, %v643
    %v648 = vand.u32 2147483647, %v638
    %vm649 = vcmp.eq.f32.partialorder %v648, 8.507059e+37
    %v650 = vand.u32 %v638, 2147483648
    %v651 = vor.u32 1.1754944e-38, %v650
    %v652 = vsel %vm649, %v651, %v647
    %v653 = vmul.f32 1.0, %v652
    %v654 = vxor.u32 %v632, 2147483648
    %v655 = vmul.f32 %v654, 1.442695
    %v656 = vpow.pop %v655
    %v657 = vadd.f32 %v656, 1.0
    %v658 = vrcp.pop %v657
    %v659 = vmul.f32 %v657, %v658
    %v660 = vsub.f32 1.0, %v659
    %v661 = vmul.f32 %v658, %v660
    %v662 = vadd.f32 %v658, %v661
    %vm663 = vweird.f32 %v657
    %vm664 = vweird.f32 %v658
    %vm665 = vmor %vm663, %vm664
    %v666 = vsel %vm665, %v658, %v662
    %v667 = vand.u32 2147483647, %v657
    %vm668 = vcmp.eq.f32.partialorder %v667, 8.507059e+37
    %v669 = vand.u32 %v657, 2147483648
    %v670 = vor.u32 1.1754944e-38, %v669
    %v671 = vsel %vm668, %v670, %v666
    %v672 = vmul.f32 1.0, %v671
    %v673 = vtanh.pop %v633
    %v674 = vxor.u32 %v634, 2147483648
    %v675 = vmul.f32 %v674, 1.442695
    %v676 = vpow.pop %v675
    %v677 = vadd.f32 %v676, 1.0
    %v678 = vrcp.pop %v677
    %v679 = vmul.f32 %v677, %v678
    %v680 = vsub.f32 1.0, %v679
    %v681 = vmul.f32 %v678, %v680
    %v682 = vadd.f32 %v678, %v681
    %vm683 = vweird.f32 %v677
    %vm684 = vweird.f32 %v678
    %vm685 = vmor %vm683, %vm684
    %v686 = vsel %vm685, %v678, %v682
    %v687 = vand.u32 2147483647, %v677
    %vm688 = vcmp.eq.f32.partialorder %v687, 8.507059e+37
    %v689 = vand.u32 %v677, 2147483648
    %v690 = vor.u32 1.1754944e-38, %v689
    %v691 = vsel %vm688, %v690, %v686
    %v692 = vmul.f32 1.0, %v691
    %v693 = vmul.f32 %v672, %v530
    %v694 = vmul.f32 %v653, %v673
    %v695 = vadd.f32 %v693, %v694
    %v696 = vtanh.pop %v695
    %v697 = vmul.f32 %v692, %v696
    %v698 = vrot.slane %v697, 4
    %v699 = vadd.f32 %v697, %v698
    %v700 = vrot.slane %v699, 2
    %v701 = vadd.f32 %v699, %v700
    %v702 = vrot.slane %v701, 1
    %v703 = vadd.f32 %v701, %v702
    %v704 = vmul.f32 %v703, %v545
    %705 = vst [vmem:[#allocation2 + $0x1] sm:$0x1] %v704
    %v707 = vsel %vm221, %v697, 0
    %709 = vmatpush.msra.mxu0 0.0
    %710 = vmatpush.msra.mxu0 0.0
    %711 = vmatpush.msra.mxu0 0.0
    %712 = vmatpush.msra.mxu0 0.0
    %713 = vmatpush.msra.mxu0 0.0
    %714 = vmatpush.msra.mxu0 0.0
    %715 = vmatpush.msra.mxu0 0.0
    %716 = vmatpush.msra.mxu0 0.0
    %717 = vmatpush.msra.mxu0 %v378
    %718 = vmatpush.msra.mxu0 %v374
    %719 = vmatpush.msra.mxu0 %v370
    %720 = vmatpush.msra.mxu0 %v366
    %721 = vmatpush.msra.mxu0 %v362
    %722 = vmatpush.msra.mxu0 %v358
    %723 = vmatpush.msra.mxu0 %v354
    %724 = vmatpush.msra.mxu0 %v350
    %725 = vmatmul.f32.gmra.mxu0 %v707
    %v726 = vpop.f32.mrf.mxu0
    %v727 = vadd.f32 0.0, %v726
    %728 = vdwg.mxu0
    %729 = vmatpush.msra.mxu0 0.0
    %730 = vmatpush.msra.mxu0 0.0
    %731 = vmatpush.msra.mxu0 0.0
    %732 = vmatpush.msra.mxu0 0.0
    %733 = vmatpush.msra.mxu0 0.0
    %734 = vmatpush.msra.mxu0 0.0
    %735 = vmatpush.msra.mxu0 0.0
    %736 = vmatpush.msra.mxu0 0.0
    %737 = vmatpush.msra.mxu0 %v379
    %738 = vmatpush.msra.mxu0 %v375
    %739 = vmatpush.msra.mxu0 %v371
    %740 = vmatpush.msra.mxu0 %v367
    %741 = vmatpush.msra.mxu0 %v363
    %742 = vmatpush.msra.mxu0 %v359
    %743 = vmatpush.msra.mxu0 %v355
    %744 = vmatpush.msra.mxu0 %v351
    %745 = vmatmul.f32.gmra.mxu0 %v707
    %v746 = vpop.f32.mrf.mxu0
    %v747 = vadd.f32 0.0, %v746
    %748 = vdwg.mxu0
    %749 = vmatpush.msra.mxu0 0.0
    %750 = vmatpush.msra.mxu0 0.0
    %751 = vmatpush.msra.mxu0 0.0
    %752 = vmatpush.msra.mxu0 0.0
    %753 = vmatpush.msra.mxu0 0.0
    %754 = vmatpush.msra.mxu0 0.0
    %755 = vmatpush.msra.mxu0 0.0
    %756 = vmatpush.msra.mxu0 0.0
    %757 = vmatpush.msra.mxu0 %v380
    %758 = vmatpush.msra.mxu0 %v376
    %759 = vmatpush.msra.mxu0 %v372
    %760 = vmatpush.msra.mxu0 %v368
    %761 = vmatpush.msra.mxu0 %v364
    %762 = vmatpush.msra.mxu0 %v360
    %763 = vmatpush.msra.mxu0 %v356
    %764 = vmatpush.msra.mxu0 %v352
    %765 = vmatmul.f32.gmra.mxu0 %v707
    %v766 = vpop.f32.mrf.mxu0
    %v767 = vadd.f32 0.0, %v766
    %768 = vdwg.mxu0
    %769 = vmatpush.msra.mxu0 0.0
    %770 = vmatpush.msra.mxu0 0.0
    %771 = vmatpush.msra.mxu0 0.0
    %772 = vmatpush.msra.mxu0 0.0
    %773 = vmatpush.msra.mxu0 0.0
    %774 = vmatpush.msra.mxu0 0.0
    %775 = vmatpush.msra.mxu0 0.0
    %776 = vmatpush.msra.mxu0 0.0
    %777 = vmatpush.msra.mxu0 %v381
    %778 = vmatpush.msra.mxu0 %v377
    %779 = vmatpush.msra.mxu0 %v373
    %780 = vmatpush.msra.mxu0 %v369
    %781 = vmatpush.msra.mxu0 %v365
    %782 = vmatpush.msra.mxu0 %v361
    %783 = vmatpush.msra.mxu0 %v357
    %784 = vmatpush.msra.mxu0 %v353
    %785 = vmatmul.f32.gmra.mxu0 %v707
    %v786 = vpop.f32.mrf.mxu0
    %v787 = vadd.f32 0.0, %v786
    %788 = vdwg.mxu0
    %v789 = vadd.f32 %v258, %v727
    %v790 = vadd.f32 %v287, %v747
    %v791 = vadd.f32 %v316, %v767
    %v792 = vadd.f32 %v345, %v787
    %v793 = vxor.u32 %v789, 2147483648
    %v794 = vmul.f32 %v793, 1.442695
    %v795 = vpow.pop %v794
    %v796 = vadd.f32 %v795, 1.0
    %v797 = vrcp.pop %v796
    %v798 = vmul.f32 %v796, %v797
    %v799 = vsub.f32 1.0, %v798
    %v800 = vmul.f32 %v797, %v799
    %v801 = vadd.f32 %v797, %v800
    %vm802 = vweird.f32 %v796
    %vm803 = vweird.f32 %v797
    %vm804 = vmor %vm802, %vm803
    %v805 = vsel %vm804, %v797, %v801
    %v806 = vand.u32 2147483647, %v796
    %vm807 = vcmp.eq.f32.partialorder %v806, 8.507059e+37
    %v808 = vand.u32 %v796, 2147483648
    %v809 = vor.u32 1.1754944e-38, %v808
    %v810 = vsel %vm807, %v809, %v805
    %v811 = vmul.f32 1.0, %v810
    %v812 = vxor.u32 %v790, 2147483648
    %v813 = vmul.f32 %v812, 1.442695
    %v814 = vpow.pop %v813
    %v815 = vadd.f32 %v814, 1.0
    %v816 = vrcp.pop %v815
    %v817 = vmul.f32 %v815, %v816
    %v818 = vsub.f32 1.0, %v817
    %v819 = vmul.f32 %v816, %v818
    %v820 = vadd.f32 %v816, %v819
    %vm821 = vweird.f32 %v815
    %vm822 = vweird.f32 %v816
    %vm823 = vmor %vm821, %vm822
    %v824 = vsel %vm823, %v816, %v820
    %v825 = vand.u32 2147483647, %v815
    %vm826 = vcmp.eq.f32.partialorder %v825, 8.507059e+37
    %v827 = vand.u32 %v815, 2147483648
    %v828 = vor.u32 1.1754944e-38, %v827
    %v829 = vsel %vm826, %v828, %v824
    %v830 = vmul.f32 1.0, %v829
    %v831 = vtanh.pop %v791
    %v832 = vxor.u32 %v792, 2147483648
    %v833 = vmul.f32 %v832, 1.442695
    %v834 = vpow.pop %v833
    %v835 = vadd.f32 %v834, 1.0
    %v836 = vrcp.pop %v835
    %v837 = vmul.f32 %v835, %v836
    %v838 = vsub.f32 1.0, %v837
    %v839 = vmul.f32 %v836, %v838
    %v840 = vadd.f32 %v836, %v839
    %vm841 = vweird.f32 %v835
    %vm842 = vweird.f32 %v836
    %vm843 = vmor %vm841, %vm842
    %v844 = vsel %vm843, %v836, %v840
    %v845 = vand.u32 2147483647, %v835
    %vm846 = vcmp.eq.f32.partialorder %v845, 8.507059e+37
    %v847 = vand.u32 %v835, 2147483648
    %v848 = vor.u32 1.1754944e-38, %v847
    %v849 = vsel %vm846, %v848, %v844
    %v850 = vmul.f32 1.0, %v849
    %v851 = vmul.f32 %v830, %v695
    %v852 = vmul.f32 %v811, %v831
    %v853 = vadd.f32 %v851, %v852
    %v854 = vtanh.pop %v853
    %v855 = vmul.f32 %v850, %v854
    %v856 = vrot.slane %v855, 4
    %v857 = vadd.f32 %v855, %v856
    %v858 = vrot.slane %v857, 2
    %v859 = vadd.f32 %v857, %v858
    %v860 = vrot.slane %v859, 1
    %v861 = vadd.f32 %v859, %v860
    %v862 = vmul.f32 %v861, %v545
    %863 = vst [vmem:[#allocation2 + $0x2] sm:$0x1] %v862
    %v865 = vsel %vm221, %v855, 0
    %867 = vmatpush.msra.mxu0 0.0
    %868 = vmatpush.msra.mxu0 0.0
    %869 = vmatpush.msra.mxu0 0.0
    %870 = vmatpush.msra.mxu0 0.0
    %871 = vmatpush.msra.mxu0 0.0
    %872 = vmatpush.msra.mxu0 0.0
    %873 = vmatpush.msra.mxu0 0.0
    %874 = vmatpush.msra.mxu0 0.0
    %875 = vmatpush.msra.mxu0 %v378
    %876 = vmatpush.msra.mxu0 %v374
    %877 = vmatpush.msra.mxu0 %v370
    %878 = vmatpush.msra.mxu0 %v366
    %879 = vmatpush.msra.mxu0 %v362
    %880 = vmatpush.msra.mxu0 %v358
    %881 = vmatpush.msra.mxu0 %v354
    %882 = vmatpush.msra.mxu0 %v350
    %883 = vmatmul.f32.gmra.mxu0 %v865
    %v884 = vpop.f32.mrf.mxu0
    %v885 = vadd.f32 0.0, %v884
    %886 = vdwg.mxu0
    %887 = vmatpush.msra.mxu0 0.0
    %888 = vmatpush.msra.mxu0 0.0
    %889 = vmatpush.msra.mxu0 0.0
    %890 = vmatpush.msra.mxu0 0.0
    %891 = vmatpush.msra.mxu0 0.0
    %892 = vmatpush.msra.mxu0 0.0
    %893 = vmatpush.msra.mxu0 0.0
    %894 = vmatpush.msra.mxu0 0.0
    %895 = vmatpush.msra.mxu0 %v379
    %896 = vmatpush.msra.mxu0 %v375
    %897 = vmatpush.msra.mxu0 %v371
    %898 = vmatpush.msra.mxu0 %v367
    %899 = vmatpush.msra.mxu0 %v363
    %900 = vmatpush.msra.mxu0 %v359
    %901 = vmatpush.msra.mxu0 %v355
    %902 = vmatpush.msra.mxu0 %v351
    %903 = vmatmul.f32.gmra.mxu0 %v865
    %v904 = vpop.f32.mrf.mxu0
    %v905 = vadd.f32 0.0, %v904
    %906 = vdwg.mxu0
    %907 = vmatpush.msra.mxu0 0.0
    %908 = vmatpush.msra.mxu0 0.0
    %909 = vmatpush.msra.mxu0 0.0
    %910 = vmatpush.msra.mxu0 0.0
    %911 = vmatpush.msra.mxu0 0.0
    %912 = vmatpush.msra.mxu0 0.0
    %913 = vmatpush.msra.mxu0 0.0
    %914 = vmatpush.msra.mxu0 0.0
    %915 = vmatpush.msra.mxu0 %v380
    %916 = vmatpush.msra.mxu0 %v376
    %917 = vmatpush.msra.mxu0 %v372
    %918 = vmatpush.msra.mxu0 %v368
    %919 = vmatpush.msra.mxu0 %v364
    %920 = vmatpush.msra.mxu0 %v360
    %921 = vmatpush.msra.mxu0 %v356
    %922 = vmatpush.msra.mxu0 %v352
    %923 = vmatmul.f32.gmra.mxu0 %v865
    %v924 = vpop.f32.mrf.mxu0
    %v925 = vadd.f32 0.0, %v924
    %926 = vdwg.mxu0
    %927 = vmatpush.msra.mxu0 0.0
    %928 = vmatpush.msra.mxu0 0.0
    %929 = vmatpush.msra.mxu0 0.0
    %930 = vmatpush.msra.mxu0 0.0
    %931 = vmatpush.msra.mxu0 0.0
    %932 = vmatpush.msra.mxu0 0.0
    %933 = vmatpush.msra.mxu0 0.0
    %934 = vmatpush.msra.mxu0 0.0
    %935 = vmatpush.msra.mxu0 %v381
    %936 = vmatpush.msra.mxu0 %v377
    %937 = vmatpush.msra.mxu0 %v373
    %938 = vmatpush.msra.mxu0 %v369
    %939 = vmatpush.msra.mxu0 %v365
    %940 = vmatpush.msra.mxu0 %v361
    %941 = vmatpush.msra.mxu0 %v357
    %942 = vmatpush.msra.mxu0 %v353
    %943 = vmatmul.f32.gmra.mxu0 %v865
    %v944 = vpop.f32.mrf.mxu0
    %v945 = vadd.f32 0.0, %v944
    %946 = vdwg.mxu0
    %v947 = vadd.f32 %v261, %v885
    %v948 = vadd.f32 %v290, %v905
    %v949 = vadd.f32 %v319, %v925
    %v950 = vadd.f32 %v348, %v945
    %v951 = vxor.u32 %v947, 2147483648
    %v952 = vmul.f32 %v951, 1.442695
    %v953 = vpow.pop %v952
    %v954 = vadd.f32 %v953, 1.0
    %v955 = vrcp.pop %v954
    %v956 = vmul.f32 %v954, %v955
    %v957 = vsub.f32 1.0, %v956
    %v958 = vmul.f32 %v955, %v957
    %v959 = vadd.f32 %v955, %v958
    %vm960 = vweird.f32 %v954
    %vm961 = vweird.f32 %v955
    %vm962 = vmor %vm960, %vm961
    %v963 = vsel %vm962, %v955, %v959
    %v964 = vand.u32 2147483647, %v954
    %vm965 = vcmp.eq.f32.partialorder %v964, 8.507059e+37
    %v966 = vand.u32 %v954, 2147483648
    %v967 = vor.u32 1.1754944e-38, %v966
    %v968 = vsel %vm965, %v967, %v963
    %v969 = vmul.f32 1.0, %v968
    %v970 = vxor.u32 %v948, 2147483648
    %v971 = vmul.f32 %v970, 1.442695
    %v972 = vpow.pop %v971
    %v973 = vadd.f32 %v972, 1.0
    %v974 = vrcp.pop %v973
    %v975 = vmul.f32 %v973, %v974
    %v976 = vsub.f32 1.0, %v975
    %v977 = vmul.f32 %v974, %v976
    %v978 = vadd.f32 %v974, %v977
    %vm979 = vweird.f32 %v973
    %vm980 = vweird.f32 %v974
    %vm981 = vmor %vm979, %vm980
    %v982 = vsel %vm981, %v974, %v978
    %v983 = vand.u32 2147483647, %v973
    %vm984 = vcmp.eq.f32.partialorder %v983, 8.507059e+37
    %v985 = vand.u32 %v973, 2147483648
    %v986 = vor.u32 1.1754944e-38, %v985
    %v987 = vsel %vm984, %v986, %v982
    %v988 = vmul.f32 1.0, %v987
    %v989 = vtanh.pop %v949
    %v990 = vxor.u32 %v950, 2147483648
    %v991 = vmul.f32 %v990, 1.442695
    %v992 = vpow.pop %v991
    %v993 = vadd.f32 %v992, 1.0
    %v994 = vrcp.pop %v993
    %v995 = vmul.f32 %v993, %v994
    %v996 = vsub.f32 1.0, %v995
    %v997 = vmul.f32 %v994, %v996
    %v998 = vadd.f32 %v994, %v997
    %vm999 = vweird.f32 %v993
    %vm1000 = vweird.f32 %v994
    %vm1001 = vmor %vm999, %vm1000
    %v1002 = vsel %vm1001, %v994, %v998
    %v1003 = vand.u32 2147483647, %v993
    %vm1004 = vcmp.eq.f32.partialorder %v1003, 8.507059e+37
    %v1005 = vand.u32 %v993, 2147483648
    %v1006 = vor.u32 1.1754944e-38, %v1005
    %v1007 = vsel %vm1004, %v1006, %v1002
    %v1008 = vmul.f32 1.0, %v1007
    %v1009 = vmul.f32 %v988, %v853
    %v1010 = vmul.f32 %v969, %v989
    %v1011 = vadd.f32 %v1009, %v1010
    %v1012 = vtanh.pop %v1011
    %v1013 = vmul.f32 %v1008, %v1012
    %v1014 = vrot.slane %v1013, 4
    %v1015 = vadd.f32 %v1013, %v1014
    %v1016 = vrot.slane %v1015, 2
    %v1017 = vadd.f32 %v1015, %v1016
    %v1018 = vrot.slane %v1017, 1
    %v1019 = vadd.f32 %v1017, %v1018
    %v1020 = vmul.f32 %v1019, %v545
    %1021 = vst [vmem:[#allocation2 + $0x3] sm:$0x1] %v1020
    %v1022 = vld [vmem:[#allocation2] sm:$0xf]
    %v1023 = vld [vmem:[%s6] sm:$0xff]
    %v1024 = vld [vmem:[%s6 + $0x8] sm:$0xff]
    %v1025 = vld [vmem:[%s6 + $0x10] sm:$0xff]
    %v1026 = vld [vmem:[%s6 + $0x18] sm:$0xff]
    %v1027 = vld [vmem:[%s6 + $0x20] sm:$0xff]
    %v1028 = vld [vmem:[%s6 + $0x28] sm:$0xff]
    %v1029 = vld [vmem:[%s6 + $0x30] sm:$0xff]
    %v1030 = vld [vmem:[%s6 + $0x38] sm:$0xff]
    %v1031 = vld [vmem:[%s6 + $0x40] sm:$0xff]
    %v1032 = vld [vmem:[%s6 + $0x48] sm:$0xff]
    %v1033 = vld [vmem:[%s6 + $0x50] sm:$0xff]
    %v1034 = vld [vmem:[%s6 + $0x58] sm:$0xff]
    %v1035 = vld [vmem:[%s6 + $0x60] sm:$0xff]
    %v1036 = vld [vmem:[%s6 + $0x68] sm:$0xff]
    %v1037 = vld [vmem:[%s6 + $0x70] sm:$0xff]
    %v1038 = vld [vmem:[%s6 + $0x78] sm:$0xff]
    %v1039 = vld [vmem:[%s7] sm:$0x1]
    %v1041 = vperm.slane %v1039, 0
    %1043 = vmatpush.msra.mxu0 %v1038
    %1044 = vmatpush.msra.mxu0 %v1037
    %1045 = vmatpush.msra.mxu0 %v1036
    %1046 = vmatpush.msra.mxu0 %v1035
    %1047 = vmatpush.msra.mxu0 %v1034
    %1048 = vmatpush.msra.mxu0 %v1033
    %1049 = vmatpush.msra.mxu0 %v1032
    %1050 = vmatpush.msra.mxu0 %v1031
    %1051 = vmatpush.msra.mxu0 %v1030
    %1052 = vmatpush.msra.mxu0 %v1029
    %1053 = vmatpush.msra.mxu0 %v1028
    %1054 = vmatpush.msra.mxu0 %v1027
    %1055 = vmatpush.msra.mxu0 %v1026
    %1056 = vmatpush.msra.mxu0 %v1025
    %1057 = vmatpush.msra.mxu0 %v1024
    %1058 = vmatpush.msra.mxu0 %v1023
    %1059 = vmatmul.f32.gmra.mxu0 %v1022
    %v1060 = vpop.f32.mrf.mxu0
    %v1061 = vadd.f32 %v1041, %v1060
    %1062 = vdwg.mxu0
    %v1063 = vmax.f32 %v1061, 0.0
    %v1064 = vld [vmem:[#allocation7] sm:$0xff]
    %v1065 = vld [vmem:[#allocation7 + $0x8] sm:$0xff]
    %v1066 = vld [vmem:[#allocation7 + $0x10] sm:$0xff]
    %v1067 = vld [vmem:[#allocation7 + $0x18] sm:$0xff]
    %v1068 = vld [vmem:[#allocation7 + $0x20] sm:$0xff]
    %v1069 = vld [vmem:[#allocation7 + $0x28] sm:$0xff]
    %v1070 = vld [vmem:[#allocation7 + $0x30] sm:$0xff]
    %v1071 = vld [vmem:[#allocation7 + $0x38] sm:$0xff]
    %v1072 = vld [vmem:[#allocation7 + $0x40] sm:$0xff]
    %v1073 = vld [vmem:[#allocation7 + $0x48] sm:$0xff]
    %v1074 = vld [vmem:[#allocation7 + $0x50] sm:$0xff]
    %v1075 = vld [vmem:[#allocation7 + $0x58] sm:$0xff]
    %v1076 = vld [vmem:[#allocation7 + $0x60] sm:$0xff]
    %v1077 = vld [vmem:[#allocation7 + $0x68] sm:$0xff]
    %v1078 = vld [vmem:[#allocation7 + $0x70] sm:$0xff]
    %v1079 = vld [vmem:[#allocation7 + $0x78] sm:$0xff]
    %v1080 = vld [vmem:[%s9] sm:$0x1]
    %v1082 = vperm.slane %v1080, 0
    %1084 = vmatpush.msra.mxu0 %v1079
    %1085 = vmatpush.msra.mxu0 %v1078
    %1086 = vmatpush.msra.mxu0 %v1077
    %1087 = vmatpush.msra.mxu0 %v1076
    %1088 = vmatpush.msra.mxu0 %v1075
    %1089 = vmatpush.msra.mxu0 %v1074
    %1090 = vmatpush.msra.mxu0 %v1073
    %1091 = vmatpush.msra.mxu0 %v1072
    %1092 = vmatpush.msra.mxu0 %v1071
    %1093 = vmatpush.msra.mxu0 %v1070
    %1094 = vmatpush.msra.mxu0 %v1069
    %1095 = vmatpush.msra.mxu0 %v1068
    %1096 = vmatpush.msra.mxu0 %v1067
    %1097 = vmatpush.msra.mxu0 %v1066
    %1098 = vmatpush.msra.mxu0 %v1065
    %1099 = vmatpush.msra.mxu0 %v1064
    %1100 = vmatmul.f32.gmra.mxu0 %v1063
    %v1101 = vpop.f32.mrf.mxu0
    %v1102 = vadd.f32 %v1082, %v1101
    %1103 = vdwg.mxu0
    %v1104 = vmax.f32 %v1102, 0.0
    %v1105 = vld [vmem:[#allocation8] sm:$0xff]
    %v1106 = vld [vmem:[#allocation8 + $0x8] sm:$0xff]
    %v1107 = vld [vmem:[#allocation8 + $0x10] sm:$0xff]
    %v1108 = vld [vmem:[#allocation8 + $0x18] sm:$0xff]
    %v1109 = vld [vmem:[#allocation8 + $0x20] sm:$0xff]
    %v1110 = vld [vmem:[#allocation8 + $0x28] sm:$0xff]
    %v1111 = vld [vmem:[#allocation8 + $0x30] sm:$0xff]
    %v1112 = vld [vmem:[#allocation8 + $0x38] sm:$0xff]
    %v1113 = vld [vmem:[#allocation8 + $0x40] sm:$0xff]
    %v1114 = vld [vmem:[#allocation8 + $0x48] sm:$0xff]
    %v1115 = vld [vmem:[#allocation8 + $0x50] sm:$0xff]
    %v1116 = vld [vmem:[#allocation8 + $0x58] sm:$0xff]
    %v1117 = vld [vmem:[#allocation8 + $0x60] sm:$0xff]
    %v1118 = vld [vmem:[#allocation8 + $0x68] sm:$0xff]
    %v1119 = vld [vmem:[#allocation8 + $0x70] sm:$0xff]
    %v1120 = vld [vmem:[#allocation8 + $0x78] sm:$0xff]
    %v1121 = vld [vmem:[%s11] sm:$0x1]
    %v1123 = vperm.slane %v1121, 0
    %1125 = vmatpush.msra.mxu0 %v1120
    %1126 = vmatpush.msra.mxu0 %v1119
    %1127 = vmatpush.msra.mxu0 %v1118
    %1128 = vmatpush.msra.mxu0 %v1117
    %1129 = vmatpush.msra.mxu0 %v1116
    %1130 = vmatpush.msra.mxu0 %v1115
    %1131 = vmatpush.msra.mxu0 %v1114
    %1132 = vmatpush.msra.mxu0 %v1113
    %1133 = vmatpush.msra.mxu0 %v1112
    %1134 = vmatpush.msra.mxu0 %v1111
    %1135 = vmatpush.msra.mxu0 %v1110
    %1136 = vmatpush.msra.mxu0 %v1109
    %1137 = vmatpush.msra.mxu0 %v1108
    %1138 = vmatpush.msra.mxu0 %v1107
    %1139 = vmatpush.msra.mxu0 %v1106
    %1140 = vmatpush.msra.mxu0 %v1105
    %1141 = vmatmul.f32.gmra.mxu0 %v1104
    %v1142 = vpop.f32.mrf.mxu0
    %v1143 = vadd.f32 %v1123, %v1142
    %1144 = vdwg.mxu0
    %1145 = vst [vmem:[%s12] sm:$0xf] %v1143
    // Predicated region
    $region66: #{imdb_forward_pallas.1} parent=1 // pred_check
      _
    $region67: #{imdb_forward_pallas.1} parent=1 // pred_check_branch
      %1147 = sbr.rel (0) target = $region69
    $region68: #{imdb_forward_pallas.1} parent=1 // pred_region
      _
    $region69: #{imdb_forward_pallas.1} parent=1 // pred_fallthru
      _
    // Predicated region
    $region70: #{imdb_forward_pallas.1} parent=1 // pred_check
      _
    $region71: #{imdb_forward_pallas.1} parent=1 // pred_check_branch
      %1149 = sbr.rel (0) target = $region73
    $region72: #{imdb_forward_pallas.1} parent=1 // pred_region
      _
    $region73: #{imdb_forward_pallas.1} parent=1 // pred_fallthru
      _
    %1150 = vsyncpa [#allocation4], 1
    %1151 = vsyncpa [#allocation6], 1
    %1152 = vsyncpa [#allocation9], 1

</llo_original>
